<compile_context>
chip_gen: v6e
topology: v6e:2x2x1
jax: 0.10.0
libtpu: 0.0.40
codegen_flags: <defaults>
</compile_context>

<pallas_src>
import functools

import jax
import jax.numpy as jnp
from jax.experimental import pallas as pl
from jax.experimental.pallas import tpu as pltpu

B, T, H, O = 2, 8, 32, 1  # batch, seq len, hidden_size, output_size
LN_EPS = 1e-5


def decoder_rnn_kernel(x_ref, h0_ref, emb_w_ref, emb_b_ref, ln_g_ref, ln_b_ref,
                       w_ih_ref, b_ih_ref, w_hh_ref, b_hh_ref,
                       out_w_ref, out_b_ref,
                       y_ref, hN_ref, hs_scr,
                       *, seq_len, batch, hidden):
    # ---------- h-independent pre-pass, batched over all T*B rows ----------
    x = x_ref[...]                                               # (T*B, H)

    # "embedding" Linear + ReLU (weights pre-transposed in wrapper)
    e = jnp.dot(x, emb_w_ref[...],
                preferred_element_type=jnp.float32) + emb_b_ref[...]
    e = jnp.maximum(e, 0.0)

    # LayerNorm over hidden dim
    mu = jnp.mean(e, axis=-1, keepdims=True)
    var = jnp.mean((e - mu) ** 2, axis=-1, keepdims=True)
    e = (e - mu) * jax.lax.rsqrt(var + LN_EPS) * ln_g_ref[...] + ln_b_ref[...]

    # Fused input-gate pre-activations for ALL time steps: (T*B, 3H), gates (r,z,n)
    gx_all = jnp.dot(e, w_ih_ref[...],
                     preferred_element_type=jnp.float32) + b_ih_ref[...]

    w_hh = w_hh_ref[...]                                         # (H, 3H)
    b_hh = b_hh_ref[...]                                         # (1, 3H)

    # ---------- serial GRU recurrence: one fused matmul per step ----------
    h = h0_ref[...]                                              # (B, H)
    for t in range(seq_len):                                     # static unroll
        gx = jax.lax.slice(gx_all, (t * batch, 0),
                           ((t + 1) * batch, 3 * hidden))        # (B, 3H)
        gh = jnp.dot(h, w_hh, preferred_element_type=jnp.float32) + b_hh
        r = jax.nn.sigmoid(gx[:, :hidden] + gh[:, :hidden])
        z = jax.nn.sigmoid(gx[:, hidden:2 * hidden] + gh[:, hidden:2 * hidden])
        n = jnp.tanh(gx[:, 2 * hidden:] + r * gh[:, 2 * hidden:])
        h = (1.0 - z) * n + z * h
        hs_scr[t * batch:(t + 1) * batch, :] = h                 # stash hidden state

    hN_ref[...] = h                                              # written once

    # ---------- batched output projection (off the serial path) ----------
    y_ref[...] = jnp.dot(hs_scr[...], out_w_ref[...],
                         preferred_element_type=jnp.float32) + out_b_ref[...]


def decoder_rnn_forward(x, hidden, params):
    """x: (B, T, H) f32, hidden: (1, B, H) f32 -> ((B, T, O), (1, B, H))."""
    Bx, Tx, Hx = x.shape
    Ox = params["out_w"].shape[0]

    # time-major row layout: row t*B + b is (batch b, time t)
    x_flat = jnp.transpose(x, (1, 0, 2)).reshape(Tx * Bx, Hx)
    h0 = hidden[0]                                               # (B, H)

    # Wrapper-side layout plumbing: pre-transpose + fuse gate weights once.
    # w_ih/w_hh are (3, H_out, H_in) in gate order (r, z, n);
    # fused-and-transposed form is (H_in, 3*H_out) so e @ W gives [r | z | n].
    emb_w_t = params["emb_w"].T                                  # (H, H)
    w_ih_t = jnp.transpose(params["w_ih"], (2, 0, 1)).reshape(Hx, 3 * Hx)
    w_hh_t = jnp.transpose(params["w_hh"], (2, 0, 1)).reshape(Hx, 3 * Hx)
    b_ih = params["b_ih"].reshape(1, 3 * Hx)
    b_hh = params["b_hh"].reshape(1, 3 * Hx)
    out_w_t = params["out_w"].T                                  # (H, O)
    out_b = params["out_b"].reshape(1, Ox)

    kernel = functools.partial(decoder_rnn_kernel,
                               seq_len=Tx, batch=Bx, hidden=Hx)

    y_flat, hN = pl.pallas_call(
        kernel,
        out_shape=(jax.ShapeDtypeStruct((Tx * Bx, Ox), jnp.float32),
                   jax.ShapeDtypeStruct((Bx, Hx), jnp.float32)),
        scratch_shapes=[pltpu.VMEM((Tx * Bx, Hx), jnp.float32)],  # hidden states
    )(x_flat, h0,
      emb_w_t, params["emb_b"].reshape(1, Hx),
      params["ln_g"].reshape(1, Hx), params["ln_b"].reshape(1, Hx),
      w_ih_t, b_ih, w_hh_t, b_hh, out_w_t, out_b)

    y = jnp.transpose(y_flat.reshape(Tx, Bx, Ox), (1, 0, 2))     # (B, T, O)
    return y, hN.reshape(1, Bx, Hx)


def reference_forward(x, hidden, params):
    """Pure-JAX reference mirroring the PyTorch forward."""
    e = x @ params["emb_w"].T + params["emb_b"]
    e = jnp.maximum(e, 0.0)
    mu = jnp.mean(e, axis=-1, keepdims=True)
    var = jnp.mean((e - mu) ** 2, axis=-1, keepdims=True)
    e = (e - mu) / jnp.sqrt(var + LN_EPS) * params["ln_g"] + params["ln_b"]

    h = hidden[0]
    ys = []
    for t in range(e.shape[1]):
        xt = e[:, t, :]
        gx = xt @ params["w_ih"].reshape(3 * H, H).T + params["b_ih"].reshape(3 * H)
        gh = h @ params["w_hh"].reshape(3 * H, H).T + params["b_hh"].reshape(3 * H)
        r = jax.nn.sigmoid(gx[:, :H] + gh[:, :H])
        z = jax.nn.sigmoid(gx[:, H:2 * H] + gh[:, H:2 * H])
        n = jnp.tanh(gx[:, 2 * H:] + r * gh[:, 2 * H:])
        h = (1.0 - z) * n + z * h
        ys.append(h)
    hs = jnp.stack(ys, axis=1)
    y = hs @ params["out_w"].T + params["out_b"]
    return y, h.reshape(1, *h.shape)


def init_params(key):
    ks = jax.random.split(key, 8)
    bound = 1.0 / jnp.sqrt(H)
    u = lambda k, shp: jax.random.uniform(k, shp, jnp.float32, -bound, bound)
    return {
        "emb_w": u(ks[0], (H, H)),
        "emb_b": u(ks[1], (H,)),
        "ln_g": jnp.ones((H,), jnp.float32),
        "ln_b": jnp.zeros((H,), jnp.float32),
        "w_ih": u(ks[2], (3, H, H)),     # gate order r, z, n
        "b_ih": u(ks[3], (3, H)),
        "w_hh": u(ks[4], (3, H, H)),
        "b_hh": u(ks[5], (3, H)),
        "out_w": u(ks[6], (O, H)),
        "out_b": u(ks[7], (O,)),
    }


if __name__ == "__main__":
    key = jax.random.PRNGKey(0)
    k_x, k_p = jax.random.split(key)
    params = init_params(k_p)

    x = jax.random.normal(k_x, (B, T, H), jnp.float32)
    hidden = jnp.zeros((1, B, H), jnp.float32)       # initHidden

    y, h_out = decoder_rnn_forward(x, hidden, params)
    jax.block_until_ready((y, h_out))

    y_ref, h_ref = reference_forward(x, hidden, params)
    assert y.shape == (B, T, O) and h_out.shape == (1, B, H)
    assert jnp.allclose(y, y_ref, atol=1e-4, rtol=1e-4)
    assert jnp.allclose(h_out, h_ref, atol=1e-4, rtol=1e-4)

    print("KERNEL_OK")
</pallas_src>

<mosaic_0001>
module attributes {stable_mosaic.version = 11 : i64} {
  func.func @decoder_rnn_kernel(%arg0: memref<16x32xf32, #tpu.memory_space<vmem>>, %arg1: memref<2x32xf32, #tpu.memory_space<vmem>>, %arg2: memref<32x32xf32, #tpu.memory_space<vmem>>, %arg3: memref<1x32xf32, #tpu.memory_space<vmem>>, %arg4: memref<1x32xf32, #tpu.memory_space<vmem>>, %arg5: memref<1x32xf32, #tpu.memory_space<vmem>>, %arg6: memref<32x96xf32, #tpu.memory_space<vmem>>, %arg7: memref<1x96xf32, #tpu.memory_space<vmem>>, %arg8: memref<32x96xf32, #tpu.memory_space<vmem>>, %arg9: memref<1x96xf32, #tpu.memory_space<vmem>>, %arg10: memref<32x1xf32, #tpu.memory_space<vmem>>, %arg11: memref<1x1xf32, #tpu.memory_space<vmem>>, %arg12: memref<16x1xf32, #tpu.memory_space<vmem>>, %arg13: memref<2x32xf32, #tpu.memory_space<vmem>>, %arg14: memref<16x32xf32, #tpu.memory_space<vmem>>) attributes {dimension_semantics = [], scalar_prefetch = 0 : i64, scratch_operands = 1 : i64, tpu.core_type = #tpu.core_type<tc>} {
    %c0 = arith.constant 0 : index
    %c0_0 = arith.constant 0 : index
    %0 = vector.load %arg0[%c0, %c0_0] : memref<16x32xf32, #tpu.memory_space<vmem>>, vector<16x32xf32>
    %c0_1 = arith.constant 0 : index
    %c0_2 = arith.constant 0 : index
    %1 = vector.load %arg2[%c0_1, %c0_2] : memref<32x32xf32, #tpu.memory_space<vmem>>, vector<32x32xf32>
    %cst = arith.constant dense<0.000000e+00> : vector<16x32xf32>
    %2 = tpu.matmul %0, %1, %cst {dimension_numbers = #tpu.dot_dimension_numbers<[1], [0], [0], [1], [0, 0, 1, 1], [], []>} : vector<16x32xf32>, vector<32x32xf32>, vector<16x32xf32> -> vector<16x32xf32>
    %c0_3 = arith.constant 0 : index
    %c0_4 = arith.constant 0 : index
    %3 = vector.load %arg3[%c0_3, %c0_4] : memref<1x32xf32, #tpu.memory_space<vmem>>, vector<1x32xf32>
    %4 = vector.broadcast %3 : vector<1x32xf32> to vector<16x32xf32>
    %5 = arith.addf %2, %4 : vector<16x32xf32>
    %cst_5 = arith.constant 0.000000e+00 : f32
    %6 = vector.broadcast %cst_5 : f32 to vector<16x32xf32>
    %7 = arith.maximumf %5, %6 : vector<16x32xf32>
    %cst_6 = arith.constant dense<0.000000e+00> : vector<16xf32>
    %8 = vector.multi_reduction <add>, %7, %cst_6 [1] : vector<16x32xf32> to vector<16xf32>
    %9 = vector.shape_cast %8 : vector<16xf32> to vector<16x1xf32>
    %cst_7 = arith.constant 3.200000e+01 : f32
    %10 = vector.broadcast %cst_7 : f32 to vector<16x1xf32>
    %11 = arith.divf %9, %10 : vector<16x1xf32>
    %12 = vector.broadcast %11 : vector<16x1xf32> to vector<16x32xf32>
    %13 = arith.subf %7, %12 : vector<16x32xf32>
    %14 = arith.mulf %13, %13 : vector<16x32xf32>
    %cst_8 = arith.constant dense<0.000000e+00> : vector<16xf32>
    %15 = vector.multi_reduction <add>, %14, %cst_8 [1] : vector<16x32xf32> to vector<16xf32>
    %16 = vector.shape_cast %15 : vector<16xf32> to vector<16x1xf32>
    %cst_9 = arith.constant 3.200000e+01 : f32
    %17 = vector.broadcast %cst_9 : f32 to vector<16x1xf32>
    %18 = arith.divf %16, %17 : vector<16x1xf32>
    %19 = vector.broadcast %11 : vector<16x1xf32> to vector<16x32xf32>
    %20 = arith.subf %7, %19 : vector<16x32xf32>
    %cst_10 = arith.constant 9.99999974E-6 : f32
    %21 = vector.broadcast %cst_10 : f32 to vector<16x1xf32>
    %22 = arith.addf %18, %21 : vector<16x1xf32>
    %23 = math.rsqrt %22 : vector<16x1xf32>
    %24 = vector.broadcast %23 : vector<16x1xf32> to vector<16x32xf32>
    %25 = arith.mulf %20, %24 : vector<16x32xf32>
    %c0_11 = arith.constant 0 : index
    %c0_12 = arith.constant 0 : index
    %26 = vector.load %arg4[%c0_11, %c0_12] : memref<1x32xf32, #tpu.memory_space<vmem>>, vector<1x32xf32>
    %27 = vector.broadcast %26 : vector<1x32xf32> to vector<16x32xf32>
    %28 = arith.mulf %25, %27 : vector<16x32xf32>
    %c0_13 = arith.constant 0 : index
    %c0_14 = arith.constant 0 : index
    %29 = vector.load %arg5[%c0_13, %c0_14] : memref<1x32xf32, #tpu.memory_space<vmem>>, vector<1x32xf32>
    %30 = vector.broadcast %29 : vector<1x32xf32> to vector<16x32xf32>
    %31 = arith.addf %28, %30 : vector<16x32xf32>
    %c0_15 = arith.constant 0 : index
    %c0_16 = arith.constant 0 : index
    %32 = vector.load %arg6[%c0_15, %c0_16] : memref<32x96xf32, #tpu.memory_space<vmem>>, vector<32x96xf32>
    %cst_17 = arith.constant dense<0.000000e+00> : vector<16x96xf32>
    %33 = tpu.matmul %31, %32, %cst_17 {dimension_numbers = #tpu.dot_dimension_numbers<[1], [0], [0], [1], [0, 0, 1, 1], [], []>} : vector<16x32xf32>, vector<32x96xf32>, vector<16x96xf32> -> vector<16x96xf32>
    %c0_18 = arith.constant 0 : index
    %c0_19 = arith.constant 0 : index
    %34 = vector.load %arg7[%c0_18, %c0_19] : memref<1x96xf32, #tpu.memory_space<vmem>>, vector<1x96xf32>
    %35 = vector.broadcast %34 : vector<1x96xf32> to vector<16x96xf32>
    %36 = arith.addf %33, %35 : vector<16x96xf32>
    %c0_20 = arith.constant 0 : index
    %c0_21 = arith.constant 0 : index
    %37 = vector.load %arg8[%c0_20, %c0_21] : memref<32x96xf32, #tpu.memory_space<vmem>>, vector<32x96xf32>
    %c0_22 = arith.constant 0 : index
    %c0_23 = arith.constant 0 : index
    %38 = vector.load %arg9[%c0_22, %c0_23] : memref<1x96xf32, #tpu.memory_space<vmem>>, vector<1x96xf32>
    %c0_24 = arith.constant 0 : index
    %c0_25 = arith.constant 0 : index
    %39 = vector.load %arg1[%c0_24, %c0_25] : memref<2x32xf32, #tpu.memory_space<vmem>>, vector<2x32xf32>
    %40 = vector.extract_strided_slice %36 {offsets = [0, 0], sizes = [2, 96], strides = [1, 1]} : vector<16x96xf32> to vector<2x96xf32>
    %cst_26 = arith.constant dense<0.000000e+00> : vector<2x96xf32>
    %41 = tpu.matmul %39, %37, %cst_26 {dimension_numbers = #tpu.dot_dimension_numbers<[1], [0], [0], [1], [0, 0, 1, 1], [], []>} : vector<2x32xf32>, vector<32x96xf32>, vector<2x96xf32> -> vector<2x96xf32>
    %42 = vector.broadcast %38 : vector<1x96xf32> to vector<2x96xf32>
    %43 = arith.addf %41, %42 : vector<2x96xf32>
    %44 = vector.extract_strided_slice %40 {offsets = [0, 0], sizes = [2, 32], strides = [1, 1]} : vector<2x96xf32> to vector<2x32xf32>
    %45 = vector.extract_strided_slice %43 {offsets = [0, 0], sizes = [2, 32], strides = [1, 1]} : vector<2x96xf32> to vector<2x32xf32>
    %46 = arith.addf %44, %45 : vector<2x32xf32>
    %47 = arith.negf %46 : vector<2x32xf32>
    %48 = math.exp %47 : vector<2x32xf32>
    %cst_27 = arith.constant 1.000000e+00 : f32
    %49 = vector.broadcast %cst_27 : f32 to vector<2x32xf32>
    %50 = arith.addf %49, %48 : vector<2x32xf32>
    %51 = arith.divf %49, %50 : vector<2x32xf32>
    %52 = vector.extract_strided_slice %40 {offsets = [0, 32], sizes = [2, 32], strides = [1, 1]} : vector<2x96xf32> to vector<2x32xf32>
    %53 = vector.extract_strided_slice %43 {offsets = [0, 32], sizes = [2, 32], strides = [1, 1]} : vector<2x96xf32> to vector<2x32xf32>
    %54 = arith.addf %52, %53 : vector<2x32xf32>
    %55 = arith.negf %54 : vector<2x32xf32>
    %56 = math.exp %55 : vector<2x32xf32>
    %cst_28 = arith.constant 1.000000e+00 : f32
    %57 = vector.broadcast %cst_28 : f32 to vector<2x32xf32>
    %58 = arith.addf %57, %56 : vector<2x32xf32>
    %59 = arith.divf %57, %58 : vector<2x32xf32>
    %60 = vector.extract_strided_slice %40 {offsets = [0, 64], sizes = [2, 32], strides = [1, 1]} : vector<2x96xf32> to vector<2x32xf32>
    %61 = vector.extract_strided_slice %43 {offsets = [0, 64], sizes = [2, 32], strides = [1, 1]} : vector<2x96xf32> to vector<2x32xf32>
    %62 = arith.mulf %51, %61 : vector<2x32xf32>
    %63 = arith.addf %60, %62 : vector<2x32xf32>
    %64 = math.tanh %63 : vector<2x32xf32>
    %cst_29 = arith.constant 1.000000e+00 : f32
    %65 = vector.broadcast %cst_29 : f32 to vector<2x32xf32>
    %66 = arith.subf %65, %59 : vector<2x32xf32>
    %67 = arith.mulf %66, %64 : vector<2x32xf32>
    %68 = arith.mulf %59, %39 : vector<2x32xf32>
    %69 = arith.addf %67, %68 : vector<2x32xf32>
    %c0_30 = arith.constant 0 : index
    %c0_31 = arith.constant 0 : index
    %70 = vector.load %arg14[%c0_30, %c0_31] : memref<16x32xf32, #tpu.memory_space<vmem>>, vector<2x32xf32>
    tpu.vector_store %arg14[%c0_30, %c0_31], %69 {strides = array<i32>} : memref<16x32xf32, #tpu.memory_space<vmem>>, vector<2x32xf32>,
    %71 = vector.extract_strided_slice %36 {offsets = [2, 0], sizes = [2, 96], strides = [1, 1]} : vector<16x96xf32> to vector<2x96xf32>
    %cst_32 = arith.constant dense<0.000000e+00> : vector<2x96xf32>
    %72 = tpu.matmul %69, %37, %cst_32 {dimension_numbers = #tpu.dot_dimension_numbers<[1], [0], [0], [1], [0, 0, 1, 1], [], []>} : vector<2x32xf32>, vector<32x96xf32>, vector<2x96xf32> -> vector<2x96xf32>
    %73 = vector.broadcast %38 : vector<1x96xf32> to vector<2x96xf32>
    %74 = arith.addf %72, %73 : vector<2x96xf32>
    %75 = vector.extract_strided_slice %71 {offsets = [0, 0], sizes = [2, 32], strides = [1, 1]} : vector<2x96xf32> to vector<2x32xf32>
    %76 = vector.extract_strided_slice %74 {offsets = [0, 0], sizes = [2, 32], strides = [1, 1]} : vector<2x96xf32> to vector<2x32xf32>
    %77 = arith.addf %75, %76 : vector<2x32xf32>
    %78 = arith.negf %77 : vector<2x32xf32>
    %79 = math.exp %78 : vector<2x32xf32>
    %cst_33 = arith.constant 1.000000e+00 : f32
    %80 = vector.broadcast %cst_33 : f32 to vector<2x32xf32>
    %81 = arith.addf %80, %79 : vector<2x32xf32>
    %82 = arith.divf %80, %81 : vector<2x32xf32>
    %83 = vector.extract_strided_slice %71 {offsets = [0, 32], sizes = [2, 32], strides = [1, 1]} : vector<2x96xf32> to vector<2x32xf32>
    %84 = vector.extract_strided_slice %74 {offsets = [0, 32], sizes = [2, 32], strides = [1, 1]} : vector<2x96xf32> to vector<2x32xf32>
    %85 = arith.addf %83, %84 : vector<2x32xf32>
    %86 = arith.negf %85 : vector<2x32xf32>
    %87 = math.exp %86 : vector<2x32xf32>
    %cst_34 = arith.constant 1.000000e+00 : f32
    %88 = vector.broadcast %cst_34 : f32 to vector<2x32xf32>
    %89 = arith.addf %88, %87 : vector<2x32xf32>
    %90 = arith.divf %88, %89 : vector<2x32xf32>
    %91 = vector.extract_strided_slice %71 {offsets = [0, 64], sizes = [2, 32], strides = [1, 1]} : vector<2x96xf32> to vector<2x32xf32>
    %92 = vector.extract_strided_slice %74 {offsets = [0, 64], sizes = [2, 32], strides = [1, 1]} : vector<2x96xf32> to vector<2x32xf32>
    %93 = arith.mulf %82, %92 : vector<2x32xf32>
    %94 = arith.addf %91, %93 : vector<2x32xf32>
    %95 = math.tanh %94 : vector<2x32xf32>
    %cst_35 = arith.constant 1.000000e+00 : f32
    %96 = vector.broadcast %cst_35 : f32 to vector<2x32xf32>
    %97 = arith.subf %96, %90 : vector<2x32xf32>
    %98 = arith.mulf %97, %95 : vector<2x32xf32>
    %99 = arith.mulf %90, %69 : vector<2x32xf32>
    %100 = arith.addf %98, %99 : vector<2x32xf32>
    %c2 = arith.constant 2 : index
    %c0_36 = arith.constant 0 : index
    %101 = vector.load %arg14[%c2, %c0_36] : memref<16x32xf32, #tpu.memory_space<vmem>>, vector<2x32xf32>
    tpu.vector_store %arg14[%c2, %c0_36], %100 {strides = array<i32>} : memref<16x32xf32, #tpu.memory_space<vmem>>, vector<2x32xf32>,
    %102 = vector.extract_strided_slice %36 {offsets = [4, 0], sizes = [2, 96], strides = [1, 1]} : vector<16x96xf32> to vector<2x96xf32>
    %cst_37 = arith.constant dense<0.000000e+00> : vector<2x96xf32>
    %103 = tpu.matmul %100, %37, %cst_37 {dimension_numbers = #tpu.dot_dimension_numbers<[1], [0], [0], [1], [0, 0, 1, 1], [], []>} : vector<2x32xf32>, vector<32x96xf32>, vector<2x96xf32> -> vector<2x96xf32>
    %104 = vector.broadcast %38 : vector<1x96xf32> to vector<2x96xf32>
    %105 = arith.addf %103, %104 : vector<2x96xf32>
    %106 = vector.extract_strided_slice %102 {offsets = [0, 0], sizes = [2, 32], strides = [1, 1]} : vector<2x96xf32> to vector<2x32xf32>
    %107 = vector.extract_strided_slice %105 {offsets = [0, 0], sizes = [2, 32], strides = [1, 1]} : vector<2x96xf32> to vector<2x32xf32>
    %108 = arith.addf %106, %107 : vector<2x32xf32>
    %109 = arith.negf %108 : vector<2x32xf32>
    %110 = math.exp %109 : vector<2x32xf32>
    %cst_38 = arith.constant 1.000000e+00 : f32
    %111 = vector.broadcast %cst_38 : f32 to vector<2x32xf32>
    %112 = arith.addf %111, %110 : vector<2x32xf32>
    %113 = arith.divf %111, %112 : vector<2x32xf32>
    %114 = vector.extract_strided_slice %102 {offsets = [0, 32], sizes = [2, 32], strides = [1, 1]} : vector<2x96xf32> to vector<2x32xf32>
    %115 = vector.extract_strided_slice %105 {offsets = [0, 32], sizes = [2, 32], strides = [1, 1]} : vector<2x96xf32> to vector<2x32xf32>
    %116 = arith.addf %114, %115 : vector<2x32xf32>
    %117 = arith.negf %116 : vector<2x32xf32>
    %118 = math.exp %117 : vector<2x32xf32>
    %cst_39 = arith.constant 1.000000e+00 : f32
    %119 = vector.broadcast %cst_39 : f32 to vector<2x32xf32>
    %120 = arith.addf %119, %118 : vector<2x32xf32>
    %121 = arith.divf %119, %120 : vector<2x32xf32>
    %122 = vector.extract_strided_slice %102 {offsets = [0, 64], sizes = [2, 32], strides = [1, 1]} : vector<2x96xf32> to vector<2x32xf32>
    %123 = vector.extract_strided_slice %105 {offsets = [0, 64], sizes = [2, 32], strides = [1, 1]} : vector<2x96xf32> to vector<2x32xf32>
    %124 = arith.mulf %113, %123 : vector<2x32xf32>
    %125 = arith.addf %122, %124 : vector<2x32xf32>
    %126 = math.tanh %125 : vector<2x32xf32>
    %cst_40 = arith.constant 1.000000e+00 : f32
    %127 = vector.broadcast %cst_40 : f32 to vector<2x32xf32>
    %128 = arith.subf %127, %121 : vector<2x32xf32>
    %129 = arith.mulf %128, %126 : vector<2x32xf32>
    %130 = arith.mulf %121, %100 : vector<2x32xf32>
    %131 = arith.addf %129, %130 : vector<2x32xf32>
    %c4 = arith.constant 4 : index
    %c0_41 = arith.constant 0 : index
    %132 = vector.load %arg14[%c4, %c0_41] : memref<16x32xf32, #tpu.memory_space<vmem>>, vector<2x32xf32>
    tpu.vector_store %arg14[%c4, %c0_41], %131 {strides = array<i32>} : memref<16x32xf32, #tpu.memory_space<vmem>>, vector<2x32xf32>,
    %133 = vector.extract_strided_slice %36 {offsets = [6, 0], sizes = [2, 96], strides = [1, 1]} : vector<16x96xf32> to vector<2x96xf32>
    %cst_42 = arith.constant dense<0.000000e+00> : vector<2x96xf32>
    %134 = tpu.matmul %131, %37, %cst_42 {dimension_numbers = #tpu.dot_dimension_numbers<[1], [0], [0], [1], [0, 0, 1, 1], [], []>} : vector<2x32xf32>, vector<32x96xf32>, vector<2x96xf32> -> vector<2x96xf32>
    %135 = vector.broadcast %38 : vector<1x96xf32> to vector<2x96xf32>
    %136 = arith.addf %134, %135 : vector<2x96xf32>
    %137 = vector.extract_strided_slice %133 {offsets = [0, 0], sizes = [2, 32], strides = [1, 1]} : vector<2x96xf32> to vector<2x32xf32>
    %138 = vector.extract_strided_slice %136 {offsets = [0, 0], sizes = [2, 32], strides = [1, 1]} : vector<2x96xf32> to vector<2x32xf32>
    %139 = arith.addf %137, %138 : vector<2x32xf32>
    %140 = arith.negf %139 : vector<2x32xf32>
    %141 = math.exp %140 : vector<2x32xf32>
    %cst_43 = arith.constant 1.000000e+00 : f32
    %142 = vector.broadcast %cst_43 : f32 to vector<2x32xf32>
    %143 = arith.addf %142, %141 : vector<2x32xf32>
    %144 = arith.divf %142, %143 : vector<2x32xf32>
    %145 = vector.extract_strided_slice %133 {offsets = [0, 32], sizes = [2, 32], strides = [1, 1]} : vector<2x96xf32> to vector<2x32xf32>
    %146 = vector.extract_strided_slice %136 {offsets = [0, 32], sizes = [2, 32], strides = [1, 1]} : vector<2x96xf32> to vector<2x32xf32>
    %147 = arith.addf %145, %146 : vector<2x32xf32>
    %148 = arith.negf %147 : vector<2x32xf32>
    %149 = math.exp %148 : vector<2x32xf32>
    %cst_44 = arith.constant 1.000000e+00 : f32
    %150 = vector.broadcast %cst_44 : f32 to vector<2x32xf32>
    %151 = arith.addf %150, %149 : vector<2x32xf32>
    %152 = arith.divf %150, %151 : vector<2x32xf32>
    %153 = vector.extract_strided_slice %133 {offsets = [0, 64], sizes = [2, 32], strides = [1, 1]} : vector<2x96xf32> to vector<2x32xf32>
    %154 = vector.extract_strided_slice %136 {offsets = [0, 64], sizes = [2, 32], strides = [1, 1]} : vector<2x96xf32> to vector<2x32xf32>
    %155 = arith.mulf %144, %154 : vector<2x32xf32>
    %156 = arith.addf %153, %155 : vector<2x32xf32>
    %157 = math.tanh %156 : vector<2x32xf32>
    %cst_45 = arith.constant 1.000000e+00 : f32
    %158 = vector.broadcast %cst_45 : f32 to vector<2x32xf32>
    %159 = arith.subf %158, %152 : vector<2x32xf32>
    %160 = arith.mulf %159, %157 : vector<2x32xf32>
    %161 = arith.mulf %152, %131 : vector<2x32xf32>
    %162 = arith.addf %160, %161 : vector<2x32xf32>
    %c6 = arith.constant 6 : index
    %c0_46 = arith.constant 0 : index
    %163 = vector.load %arg14[%c6, %c0_46] : memref<16x32xf32, #tpu.memory_space<vmem>>, vector<2x32xf32>
    tpu.vector_store %arg14[%c6, %c0_46], %162 {strides = array<i32>} : memref<16x32xf32, #tpu.memory_space<vmem>>, vector<2x32xf32>,
    %164 = vector.extract_strided_slice %36 {offsets = [8, 0], sizes = [2, 96], strides = [1, 1]} : vector<16x96xf32> to vector<2x96xf32>
    %cst_47 = arith.constant dense<0.000000e+00> : vector<2x96xf32>
    %165 = tpu.matmul %162, %37, %cst_47 {dimension_numbers = #tpu.dot_dimension_numbers<[1], [0], [0], [1], [0, 0, 1, 1], [], []>} : vector<2x32xf32>, vector<32x96xf32>, vector<2x96xf32> -> vector<2x96xf32>
    %166 = vector.broadcast %38 : vector<1x96xf32> to vector<2x96xf32>
    %167 = arith.addf %165, %166 : vector<2x96xf32>
    %168 = vector.extract_strided_slice %164 {offsets = [0, 0], sizes = [2, 32], strides = [1, 1]} : vector<2x96xf32> to vector<2x32xf32>
    %169 = vector.extract_strided_slice %167 {offsets = [0, 0], sizes = [2, 32], strides = [1, 1]} : vector<2x96xf32> to vector<2x32xf32>
    %170 = arith.addf %168, %169 : vector<2x32xf32>
    %171 = arith.negf %170 : vector<2x32xf32>
    %172 = math.exp %171 : vector<2x32xf32>
    %cst_48 = arith.constant 1.000000e+00 : f32
    %173 = vector.broadcast %cst_48 : f32 to vector<2x32xf32>
    %174 = arith.addf %173, %172 : vector<2x32xf32>
    %175 = arith.divf %173, %174 : vector<2x32xf32>
    %176 = vector.extract_strided_slice %164 {offsets = [0, 32], sizes = [2, 32], strides = [1, 1]} : vector<2x96xf32> to vector<2x32xf32>
    %177 = vector.extract_strided_slice %167 {offsets = [0, 32], sizes = [2, 32], strides = [1, 1]} : vector<2x96xf32> to vector<2x32xf32>
    %178 = arith.addf %176, %177 : vector<2x32xf32>
    %179 = arith.negf %178 : vector<2x32xf32>
    %180 = math.exp %179 : vector<2x32xf32>
    %cst_49 = arith.constant 1.000000e+00 : f32
    %181 = vector.broadcast %cst_49 : f32 to vector<2x32xf32>
    %182 = arith.addf %181, %180 : vector<2x32xf32>
    %183 = arith.divf %181, %182 : vector<2x32xf32>
    %184 = vector.extract_strided_slice %164 {offsets = [0, 64], sizes = [2, 32], strides = [1, 1]} : vector<2x96xf32> to vector<2x32xf32>
    %185 = vector.extract_strided_slice %167 {offsets = [0, 64], sizes = [2, 32], strides = [1, 1]} : vector<2x96xf32> to vector<2x32xf32>
    %186 = arith.mulf %175, %185 : vector<2x32xf32>
    %187 = arith.addf %184, %186 : vector<2x32xf32>
    %188 = math.tanh %187 : vector<2x32xf32>
    %cst_50 = arith.constant 1.000000e+00 : f32
    %189 = vector.broadcast %cst_50 : f32 to vector<2x32xf32>
    %190 = arith.subf %189, %183 : vector<2x32xf32>
    %191 = arith.mulf %190, %188 : vector<2x32xf32>
    %192 = arith.mulf %183, %162 : vector<2x32xf32>
    %193 = arith.addf %191, %192 : vector<2x32xf32>
    %c8 = arith.constant 8 : index
    %c0_51 = arith.constant 0 : index
    %194 = vector.load %arg14[%c8, %c0_51] : memref<16x32xf32, #tpu.memory_space<vmem>>, vector<2x32xf32>
    tpu.vector_store %arg14[%c8, %c0_51], %193 {strides = array<i32>} : memref<16x32xf32, #tpu.memory_space<vmem>>, vector<2x32xf32>,
    %195 = vector.extract_strided_slice %36 {offsets = [10, 0], sizes = [2, 96], strides = [1, 1]} : vector<16x96xf32> to vector<2x96xf32>
    %cst_52 = arith.constant dense<0.000000e+00> : vector<2x96xf32>
    %196 = tpu.matmul %193, %37, %cst_52 {dimension_numbers = #tpu.dot_dimension_numbers<[1], [0], [0], [1], [0, 0, 1, 1], [], []>} : vector<2x32xf32>, vector<32x96xf32>, vector<2x96xf32> -> vector<2x96xf32>
    %197 = vector.broadcast %38 : vector<1x96xf32> to vector<2x96xf32>
    %198 = arith.addf %196, %197 : vector<2x96xf32>
    %199 = vector.extract_strided_slice %195 {offsets = [0, 0], sizes = [2, 32], strides = [1, 1]} : vector<2x96xf32> to vector<2x32xf32>
    %200 = vector.extract_strided_slice %198 {offsets = [0, 0], sizes = [2, 32], strides = [1, 1]} : vector<2x96xf32> to vector<2x32xf32>
    %201 = arith.addf %199, %200 : vector<2x32xf32>
    %202 = arith.negf %201 : vector<2x32xf32>
    %203 = math.exp %202 : vector<2x32xf32>
    %cst_53 = arith.constant 1.000000e+00 : f32
    %204 = vector.broadcast %cst_53 : f32 to vector<2x32xf32>
    %205 = arith.addf %204, %203 : vector<2x32xf32>
    %206 = arith.divf %204, %205 : vector<2x32xf32>
    %207 = vector.extract_strided_slice %195 {offsets = [0, 32], sizes = [2, 32], strides = [1, 1]} : vector<2x96xf32> to vector<2x32xf32>
    %208 = vector.extract_strided_slice %198 {offsets = [0, 32], sizes = [2, 32], strides = [1, 1]} : vector<2x96xf32> to vector<2x32xf32>
    %209 = arith.addf %207, %208 : vector<2x32xf32>
    %210 = arith.negf %209 : vector<2x32xf32>
    %211 = math.exp %210 : vector<2x32xf32>
    %cst_54 = arith.constant 1.000000e+00 : f32
    %212 = vector.broadcast %cst_54 : f32 to vector<2x32xf32>
    %213 = arith.addf %212, %211 : vector<2x32xf32>
    %214 = arith.divf %212, %213 : vector<2x32xf32>
    %215 = vector.extract_strided_slice %195 {offsets = [0, 64], sizes = [2, 32], strides = [1, 1]} : vector<2x96xf32> to vector<2x32xf32>
    %216 = vector.extract_strided_slice %198 {offsets = [0, 64], sizes = [2, 32], strides = [1, 1]} : vector<2x96xf32> to vector<2x32xf32>
    %217 = arith.mulf %206, %216 : vector<2x32xf32>
    %218 = arith.addf %215, %217 : vector<2x32xf32>
    %219 = math.tanh %218 : vector<2x32xf32>
    %cst_55 = arith.constant 1.000000e+00 : f32
    %220 = vector.broadcast %cst_55 : f32 to vector<2x32xf32>
    %221 = arith.subf %220, %214 : vector<2x32xf32>
    %222 = arith.mulf %221, %219 : vector<2x32xf32>
    %223 = arith.mulf %214, %193 : vector<2x32xf32>
    %224 = arith.addf %222, %223 : vector<2x32xf32>
    %c10 = arith.constant 10 : index
    %c0_56 = arith.constant 0 : index
    %225 = vector.load %arg14[%c10, %c0_56] : memref<16x32xf32, #tpu.memory_space<vmem>>, vector<2x32xf32>
    tpu.vector_store %arg14[%c10, %c0_56], %224 {strides = array<i32>} : memref<16x32xf32, #tpu.memory_space<vmem>>, vector<2x32xf32>,
    %226 = vector.extract_strided_slice %36 {offsets = [12, 0], sizes = [2, 96], strides = [1, 1]} : vector<16x96xf32> to vector<2x96xf32>
    %cst_57 = arith.constant dense<0.000000e+00> : vector<2x96xf32>
    %227 = tpu.matmul %224, %37, %cst_57 {dimension_numbers = #tpu.dot_dimension_numbers<[1], [0], [0], [1], [0, 0, 1, 1], [], []>} : vector<2x32xf32>, vector<32x96xf32>, vector<2x96xf32> -> vector<2x96xf32>
    %228 = vector.broadcast %38 : vector<1x96xf32> to vector<2x96xf32>
    %229 = arith.addf %227, %228 : vector<2x96xf32>
    %230 = vector.extract_strided_slice %226 {offsets = [0, 0], sizes = [2, 32], strides = [1, 1]} : vector<2x96xf32> to vector<2x32xf32>
    %231 = vector.extract_strided_slice %229 {offsets = [0, 0], sizes = [2, 32], strides = [1, 1]} : vector<2x96xf32> to vector<2x32xf32>
    %232 = arith.addf %230, %231 : vector<2x32xf32>
    %233 = arith.negf %232 : vector<2x32xf32>
    %234 = math.exp %233 : vector<2x32xf32>
    %cst_58 = arith.constant 1.000000e+00 : f32
    %235 = vector.broadcast %cst_58 : f32 to vector<2x32xf32>
    %236 = arith.addf %235, %234 : vector<2x32xf32>
    %237 = arith.divf %235, %236 : vector<2x32xf32>
    %238 = vector.extract_strided_slice %226 {offsets = [0, 32], sizes = [2, 32], strides = [1, 1]} : vector<2x96xf32> to vector<2x32xf32>
    %239 = vector.extract_strided_slice %229 {offsets = [0, 32], sizes = [2, 32], strides = [1, 1]} : vector<2x96xf32> to vector<2x32xf32>
    %240 = arith.addf %238, %239 : vector<2x32xf32>
    %241 = arith.negf %240 : vector<2x32xf32>
    %242 = math.exp %241 : vector<2x32xf32>
    %cst_59 = arith.constant 1.000000e+00 : f32
    %243 = vector.broadcast %cst_59 : f32 to vector<2x32xf32>
    %244 = arith.addf %243, %242 : vector<2x32xf32>
    %245 = arith.divf %243, %244 : vector<2x32xf32>
    %246 = vector.extract_strided_slice %226 {offsets = [0, 64], sizes = [2, 32], strides = [1, 1]} : vector<2x96xf32> to vector<2x32xf32>
    %247 = vector.extract_strided_slice %229 {offsets = [0, 64], sizes = [2, 32], strides = [1, 1]} : vector<2x96xf32> to vector<2x32xf32>
    %248 = arith.mulf %237, %247 : vector<2x32xf32>
    %249 = arith.addf %246, %248 : vector<2x32xf32>
    %250 = math.tanh %249 : vector<2x32xf32>
    %cst_60 = arith.constant 1.000000e+00 : f32
    %251 = vector.broadcast %cst_60 : f32 to vector<2x32xf32>
    %252 = arith.subf %251, %245 : vector<2x32xf32>
    %253 = arith.mulf %252, %250 : vector<2x32xf32>
    %254 = arith.mulf %245, %224 : vector<2x32xf32>
    %255 = arith.addf %253, %254 : vector<2x32xf32>
    %c12 = arith.constant 12 : index
    %c0_61 = arith.constant 0 : index
    %256 = vector.load %arg14[%c12, %c0_61] : memref<16x32xf32, #tpu.memory_space<vmem>>, vector<2x32xf32>
    tpu.vector_store %arg14[%c12, %c0_61], %255 {strides = array<i32>} : memref<16x32xf32, #tpu.memory_space<vmem>>, vector<2x32xf32>,
    %257 = vector.extract_strided_slice %36 {offsets = [14, 0], sizes = [2, 96], strides = [1, 1]} : vector<16x96xf32> to vector<2x96xf32>
    %cst_62 = arith.constant dense<0.000000e+00> : vector<2x96xf32>
    %258 = tpu.matmul %255, %37, %cst_62 {dimension_numbers = #tpu.dot_dimension_numbers<[1], [0], [0], [1], [0, 0, 1, 1], [], []>} : vector<2x32xf32>, vector<32x96xf32>, vector<2x96xf32> -> vector<2x96xf32>
    %259 = vector.broadcast %38 : vector<1x96xf32> to vector<2x96xf32>
    %260 = arith.addf %258, %259 : vector<2x96xf32>
    %261 = vector.extract_strided_slice %257 {offsets = [0, 0], sizes = [2, 32], strides = [1, 1]} : vector<2x96xf32> to vector<2x32xf32>
    %262 = vector.extract_strided_slice %260 {offsets = [0, 0], sizes = [2, 32], strides = [1, 1]} : vector<2x96xf32> to vector<2x32xf32>
    %263 = arith.addf %261, %262 : vector<2x32xf32>
    %264 = arith.negf %263 : vector<2x32xf32>
    %265 = math.exp %264 : vector<2x32xf32>
    %cst_63 = arith.constant 1.000000e+00 : f32
    %266 = vector.broadcast %cst_63 : f32 to vector<2x32xf32>
    %267 = arith.addf %266, %265 : vector<2x32xf32>
    %268 = arith.divf %266, %267 : vector<2x32xf32>
    %269 = vector.extract_strided_slice %257 {offsets = [0, 32], sizes = [2, 32], strides = [1, 1]} : vector<2x96xf32> to vector<2x32xf32>
    %270 = vector.extract_strided_slice %260 {offsets = [0, 32], sizes = [2, 32], strides = [1, 1]} : vector<2x96xf32> to vector<2x32xf32>
    %271 = arith.addf %269, %270 : vector<2x32xf32>
    %272 = arith.negf %271 : vector<2x32xf32>
    %273 = math.exp %272 : vector<2x32xf32>
    %cst_64 = arith.constant 1.000000e+00 : f32
    %274 = vector.broadcast %cst_64 : f32 to vector<2x32xf32>
    %275 = arith.addf %274, %273 : vector<2x32xf32>
    %276 = arith.divf %274, %275 : vector<2x32xf32>
    %277 = vector.extract_strided_slice %257 {offsets = [0, 64], sizes = [2, 32], strides = [1, 1]} : vector<2x96xf32> to vector<2x32xf32>
    %278 = vector.extract_strided_slice %260 {offsets = [0, 64], sizes = [2, 32], strides = [1, 1]} : vector<2x96xf32> to vector<2x32xf32>
    %279 = arith.mulf %268, %278 : vector<2x32xf32>
    %280 = arith.addf %277, %279 : vector<2x32xf32>
    %281 = math.tanh %280 : vector<2x32xf32>
    %cst_65 = arith.constant 1.000000e+00 : f32
    %282 = vector.broadcast %cst_65 : f32 to vector<2x32xf32>
    %283 = arith.subf %282, %276 : vector<2x32xf32>
    %284 = arith.mulf %283, %281 : vector<2x32xf32>
    %285 = arith.mulf %276, %255 : vector<2x32xf32>
    %286 = arith.addf %284, %285 : vector<2x32xf32>
    %c14 = arith.constant 14 : index
    %c0_66 = arith.constant 0 : index
    %287 = vector.load %arg14[%c14, %c0_66] : memref<16x32xf32, #tpu.memory_space<vmem>>, vector<2x32xf32>
    tpu.vector_store %arg14[%c14, %c0_66], %286 {strides = array<i32>} : memref<16x32xf32, #tpu.memory_space<vmem>>, vector<2x32xf32>,
    %c0_67 = arith.constant 0 : index
    %c0_68 = arith.constant 0 : index
    %288 = vector.load %arg13[%c0_67, %c0_68] : memref<2x32xf32, #tpu.memory_space<vmem>>, vector<2x32xf32>
    tpu.vector_store %arg13[%c0_67, %c0_68], %286 {strides = array<i32>} : memref<2x32xf32, #tpu.memory_space<vmem>>, vector<2x32xf32>,
    %c0_69 = arith.constant 0 : index
    %c0_70 = arith.constant 0 : index
    %289 = vector.load %arg14[%c0_69, %c0_70] : memref<16x32xf32, #tpu.memory_space<vmem>>, vector<16x32xf32>
    %c0_71 = arith.constant 0 : index
    %c0_72 = arith.constant 0 : index
    %290 = vector.load %arg10[%c0_71, %c0_72] : memref<32x1xf32, #tpu.memory_space<vmem>>, vector<32x1xf32>
    %cst_73 = arith.constant dense<0.000000e+00> : vector<16x1xf32>
    %291 = tpu.matmul %289, %290, %cst_73 {dimension_numbers = #tpu.dot_dimension_numbers<[1], [0], [0], [1], [0, 0, 1, 1], [], []>} : vector<16x32xf32>, vector<32x1xf32>, vector<16x1xf32> -> vector<16x1xf32>
    %c0_74 = arith.constant 0 : index
    %c0_75 = arith.constant 0 : index
    %292 = vector.load %arg11[%c0_74, %c0_75] : memref<1x1xf32, #tpu.memory_space<vmem>>, vector<1x1xf32>
    %293 = vector.broadcast %292 : vector<1x1xf32> to vector<16x1xf32>
    %294 = arith.addf %291, %293 : vector<16x1xf32>
    %c0_76 = arith.constant 0 : index
    %c0_77 = arith.constant 0 : index
    %295 = vector.load %arg12[%c0_76, %c0_77] : memref<16x1xf32, #tpu.memory_space<vmem>>, vector<16x1xf32>
    tpu.vector_store %arg12[%c0_76, %c0_77], %294 {strides = array<i32>} : memref<16x1xf32, #tpu.memory_space<vmem>>, vector<16x1xf32>,
    return
  }
}

</mosaic_0001>

<llo_original>
// kernel: tpu_custom_call.1
$region0: #{tpu_custom_call.1}
  #allocation0 [shape = 'u32[]', space=smem, size = 0x4, offset = 0x4, fixed_abs, tag = 'smem constant byte address 0x4 - core index']
  #allocation1 [shape = 'u32[144,128]{1,0:T(1,128)}', space=vmem, size = 0x12000, scoped, tag = 'internal scratch']
  #allocation2 [shape = 'f32[16,32]{1,0:T(8,128)}', space=vmem, size = 0x2000, scoped, tag = 'scratch operand']
  #allocation3 [shape = 'f32[1,1]{1,0:T(1,128)S(1)}', space=vmem, size = 0x200, scoped, tag = 'scoped memory for tpu_custom_call.1']
  %s0 = inlined_call_operand.hbm [shape: f32[16,32], index: 0, kind: input, shape index: {}]
  %s1 = inlined_call_operand.vmem [shape: f32[2,32], index: 1, kind: input, shape index: {}]
  %s2 = inlined_call_operand.vmem [shape: f32[32,32], index: 2, kind: input, shape index: {}]
  %s3 = inlined_call_operand.vmem [shape: f32[1,32], index: 3, kind: input, shape index: {}]
  %s4 = inlined_call_operand.vmem [shape: f32[1,32], index: 4, kind: input, shape index: {}]
  %s5 = inlined_call_operand.vmem [shape: f32[1,32], index: 5, kind: input, shape index: {}]
  %s6 = inlined_call_operand.hbm [shape: f32[32,96], index: 6, kind: input, shape index: {}]
  %s7 = inlined_call_operand.vmem [shape: f32[1,96], index: 7, kind: input, shape index: {}]
  %s8 = inlined_call_operand.hbm [shape: f32[32,96], index: 8, kind: input, shape index: {}]
  %s9 = inlined_call_operand.vmem [shape: f32[1,96], index: 9, kind: input, shape index: {}]
  %s10 = inlined_call_operand.vmem [shape: f32[32,1], index: 10, kind: input, shape index: {}]
  %s11 = inlined_call_operand.<no memory space> [shape: f32[1,1], index: 11, kind: input, shape index: {}]
  %s12 = inlined_call_operand.vmem [shape: f32[16,1], index: 12, kind: output, shape index: {0}]
  %s13 = inlined_call_operand.hbm [shape: f32[2,32], index: 13, kind: output, shape index: {1}]
  %14 = xla_tuple %s12, %s13
  %s15 = sld [smem:[#allocation0]]
  $region78: #{tpu_custom_call.1} parent=0
    _
  %s17 = ssub.s32 1, %s15
  %s18 = scalar_select 0, %s17, %s15
  %v19 = vstv %s11
  %20 = vst [vmem:[#allocation3] sm:$0x1] %v19
  $region1: #{tpu_custom_call.1} parent=0
    #allocation4 [shape = 'u8[8192]{0}', space=vmem, size = 0x2000, scoped, tag = 'input window, operand 0, single buffered']
    #allocation5 [shape = 's32[1]{0}', space=sflag, size = 0x4, scoped, tag = 'scoped memory for tpu_custom_call.1']
    #allocation6 [shape = 's32[1]{0}', space=sflag, size = 0x4, scoped, tag = 'scoped memory for tpu_custom_call.1']
    #allocation7 [shape = 'u8[16384]{0}', space=vmem, size = 0x4000, scoped, tag = 'input window, operand 6, single buffered']
    #allocation8 [shape = 's32[1]{0}', space=sflag, size = 0x4, scoped, tag = 'scoped memory for tpu_custom_call.1']
    #allocation9 [shape = 'u8[16384]{0}', space=vmem, size = 0x4000, scoped, tag = 'input window, operand 8, single buffered']
    #allocation10 [shape = 'u8[1024]{0}', space=vmem, size = 0x400, scoped, tag = 'output window, operand 1, single buffered']
    %21 = vsyncpa [#allocation5], 0
    %22 = vsyncpa [#allocation8], 0
    %23 = vsyncpa [#allocation6], 0
    // Predicated region
    $region2: #{tpu_custom_call.1} parent=1 // pred_check
      _
    $region3: #{tpu_custom_call.1} parent=1 // pred_check_branch
      %25 = sbr.rel (0) target = $region5
    $region4: #{tpu_custom_call.1} parent=1 // pred_region
      %s27 = ssub.s32 256, 256
      %28 = vsyncadd [#allocation5], %s27
      %s29 = sshll.u32 [#allocation4], 4
      %s30 = int_to_ptr.vmem [resolvable:$true] %s29
      %35 = dma.hbm_to_vmem [thread:$0]  %s0, 256, %s30, [#allocation5], 128, 128, 8
    $region5: #{tpu_custom_call.1} parent=1 // pred_fallthru
      _
    // Predicated region
    $region6: #{tpu_custom_call.1} parent=1 // pred_check
      _
    $region7: #{tpu_custom_call.1} parent=1 // pred_check_branch
      %37 = sbr.rel (0) target = $region9
    $region8: #{tpu_custom_call.1} parent=1 // pred_region
      _
    $region9: #{tpu_custom_call.1} parent=1 // pred_fallthru
      _
    // Predicated region
    $region10: #{tpu_custom_call.1} parent=1 // pred_check
      _
    $region11: #{tpu_custom_call.1} parent=1 // pred_check_branch
      %39 = sbr.rel (0) target = $region13
    $region12: #{tpu_custom_call.1} parent=1 // pred_region
      _
    $region13: #{tpu_custom_call.1} parent=1 // pred_fallthru
      _
    // Predicated region
    $region14: #{tpu_custom_call.1} parent=1 // pred_check
      _
    $region15: #{tpu_custom_call.1} parent=1 // pred_check_branch
      %41 = sbr.rel (0) target = $region17
    $region16: #{tpu_custom_call.1} parent=1 // pred_region
      _
    $region17: #{tpu_custom_call.1} parent=1 // pred_fallthru
      _
    // Predicated region
    $region18: #{tpu_custom_call.1} parent=1 // pred_check
      _
    $region19: #{tpu_custom_call.1} parent=1 // pred_check_branch
      %43 = sbr.rel (0) target = $region21
    $region20: #{tpu_custom_call.1} parent=1 // pred_region
      _
    $region21: #{tpu_custom_call.1} parent=1 // pred_fallthru
      _
    // Predicated region
    $region22: #{tpu_custom_call.1} parent=1 // pred_check
      _
    $region23: #{tpu_custom_call.1} parent=1 // pred_check_branch
      %45 = sbr.rel (0) target = $region25
    $region24: #{tpu_custom_call.1} parent=1 // pred_region
      _
    $region25: #{tpu_custom_call.1} parent=1 // pred_fallthru
      _
    // Predicated region
    $region26: #{tpu_custom_call.1} parent=1 // pred_check
      _
    $region27: #{tpu_custom_call.1} parent=1 // pred_check_branch
      %47 = sbr.rel (0) target = $region29
    $region28: #{tpu_custom_call.1} parent=1 // pred_region
      %s49 = ssub.s32 512, 512
      %50 = vsyncadd [#allocation8], %s49
      %s51 = sshll.u32 [#allocation7], 4
      %s52 = int_to_ptr.vmem [resolvable:$true] %s51
      %57 = dma.hbm_to_vmem [thread:$0]  %s6, 512, %s52, [#allocation8], 128, 128, 8
    $region29: #{tpu_custom_call.1} parent=1 // pred_fallthru
      _
    // Predicated region
    $region30: #{tpu_custom_call.1} parent=1 // pred_check
      _
    $region31: #{tpu_custom_call.1} parent=1 // pred_check_branch
      %59 = sbr.rel (0) target = $region33
    $region32: #{tpu_custom_call.1} parent=1 // pred_region
      _
    $region33: #{tpu_custom_call.1} parent=1 // pred_fallthru
      _
    // Predicated region
    $region34: #{tpu_custom_call.1} parent=1 // pred_check
      _
    $region35: #{tpu_custom_call.1} parent=1 // pred_check_branch
      %61 = sbr.rel (0) target = $region37
    $region36: #{tpu_custom_call.1} parent=1 // pred_region
      %s63 = ssub.s32 512, 512
      %64 = vsyncadd [#allocation8], %s63
      %s65 = sshll.u32 [#allocation9], 4
      %s66 = int_to_ptr.vmem [resolvable:$true] %s65
      %71 = dma.hbm_to_vmem [thread:$0]  %s8, 512, %s66, [#allocation8], 128, 128, 8
    $region37: #{tpu_custom_call.1} parent=1 // pred_fallthru
      _
    // Predicated region
    $region38: #{tpu_custom_call.1} parent=1 // pred_check
      _
    $region39: #{tpu_custom_call.1} parent=1 // pred_check_branch
      %73 = sbr.rel (0) target = $region41
    $region40: #{tpu_custom_call.1} parent=1 // pred_region
      _
    $region41: #{tpu_custom_call.1} parent=1 // pred_fallthru
      _
    // Predicated region
    $region42: #{tpu_custom_call.1} parent=1 // pred_check
      _
    $region43: #{tpu_custom_call.1} parent=1 // pred_check_branch
      %75 = sbr.rel (0) target = $region45
    $region44: #{tpu_custom_call.1} parent=1 // pred_region
      _
    $region45: #{tpu_custom_call.1} parent=1 // pred_fallthru
      _
    // Predicated region
    $region46: #{tpu_custom_call.1} parent=1 // pred_check
      _
    $region47: #{tpu_custom_call.1} parent=1 // pred_check_branch
      %77 = sbr.rel (0) target = $region49
    $region48: #{tpu_custom_call.1} parent=1 // pred_region
      _
    $region49: #{tpu_custom_call.1} parent=1 // pred_fallthru
      _
    // Predicated region
    $region50: #{tpu_custom_call.1} parent=1 // pred_check
      _
    $region51: #{tpu_custom_call.1} parent=1 // pred_check_branch
      %79 = sbr.rel (0) target = $region53
    $region52: #{tpu_custom_call.1} parent=1 // pred_region
      %80 = dma.done [#allocation5], 256
    $region53: #{tpu_custom_call.1} parent=1 // pred_fallthru
      _
    // Predicated region
    $region54: #{tpu_custom_call.1} parent=1 // pred_check
      _
    $region55: #{tpu_custom_call.1} parent=1 // pred_check_branch
      %82 = sbr.rel (0) target = $region57
    $region56: #{tpu_custom_call.1} parent=1 // pred_region
      %83 = dma.done [#allocation8], 512
    $region57: #{tpu_custom_call.1} parent=1 // pred_fallthru
      _
    // Predicated region
    $region58: #{tpu_custom_call.1} parent=1 // pred_check
      _
    $region59: #{tpu_custom_call.1} parent=1 // pred_check_branch
      %85 = sbr.rel (0) target = $region61
    $region60: #{tpu_custom_call.1} parent=1 // pred_region
      %86 = dma.done [#allocation8], 512
    $region61: #{tpu_custom_call.1} parent=1 // pred_fallthru
      _
    %v87 = vld [vmem:[#allocation4] sm:$0xff]
    %v88 = vld [vmem:[#allocation4 + $0x8] sm:$0xff]
    %v89 = vld [vmem:[%s2] sm:$0xff]
    %v90 = vld [vmem:[%s2 + $0x8] sm:$0xff]
    %v91 = vld [vmem:[%s2 + $0x10] sm:$0xff]
    %v92 = vld [vmem:[%s2 + $0x18] sm:$0xff]
    %v93 = vld [vmem:[%s3] sm:$0x1]
    %v95 = vlaneseq
    %v96 = vshrl.u32 %v95, 7
    %v97 = vsub.s32 0, %v96
    %v98 = vrot.slane %v93, %v97
    %vm100 = vcmask 261120
    %v102 = vsel %vm100, %v87, 0
    %v105 = vsel %vm100, %v88, 0
    %107 = vmatprep.subr.mxu0 0.0
    %108 = vmatpush1.msra.mxu0 0.0
    %109 = vmatprep.subr.mxu0 0.0
    %110 = vmatpush1.msra.mxu0 0.0
    %111 = vmatprep.subr.mxu0 0.0
    %112 = vmatpush1.msra.mxu0 0.0
    %113 = vmatprep.subr.mxu0 0.0
    %114 = vmatpush1.msra.mxu0 0.0
    %115 = vmatprep.subr.mxu0 0.0
    %116 = vmatpush1.msra.mxu0 0.0
    %117 = vmatprep.subr.mxu0 0.0
    %118 = vmatpush1.msra.mxu0 0.0
    %119 = vmatprep.subr.mxu0 0.0
    %120 = vmatpush1.msra.mxu0 0.0
    %121 = vmatprep.subr.mxu0 0.0
    %122 = vmatpush1.msra.mxu0 0.0
    %123 = vmatprep.subr.mxu0 0.0
    %124 = vmatpush1.msra.mxu0 0.0
    %125 = vmatprep.subr.mxu0 0.0
    %126 = vmatpush1.msra.mxu0 0.0
    %127 = vmatprep.subr.mxu0 0.0
    %128 = vmatpush1.msra.mxu0 0.0
    %129 = vmatprep.subr.mxu0 0.0
    %130 = vmatpush1.msra.mxu0 0.0
    %131 = vmatprep.subr.mxu0 0.0
    %132 = vmatpush1.msra.mxu0 %v92
    %133 = vmatprep.subr.mxu0 0.0
    %134 = vmatpush1.msra.mxu0 %v91
    %135 = vmatprep.subr.mxu0 0.0
    %136 = vmatpush1.msra.mxu0 %v90
    %137 = vmatprep.subr.mxu0 0.0
    %138 = vmatpush1.msra.mxu0 %v89
    %139 = vmatprep.subr.mxu0 0.0
    %140 = vmatpush2.msra.mxu0 0.0
    %141 = vmatprep.subr.mxu0 0.0
    %142 = vmatpush2.msra.mxu0 0.0
    %143 = vmatprep.subr.mxu0 0.0
    %144 = vmatpush2.msra.mxu0 0.0
    %145 = vmatprep.subr.mxu0 0.0
    %146 = vmatpush2.msra.mxu0 0.0
    %147 = vmatprep.subr.mxu0 0.0
    %148 = vmatpush2.msra.mxu0 0.0
    %149 = vmatprep.subr.mxu0 0.0
    %150 = vmatpush2.msra.mxu0 0.0
    %151 = vmatprep.subr.mxu0 0.0
    %152 = vmatpush2.msra.mxu0 0.0
    %153 = vmatprep.subr.mxu0 0.0
    %154 = vmatpush2.msra.mxu0 0.0
    %155 = vmatprep.subr.mxu0 0.0
    %156 = vmatpush2.msra.mxu0 0.0
    %157 = vmatprep.subr.mxu0 0.0
    %158 = vmatpush2.msra.mxu0 0.0
    %159 = vmatprep.subr.mxu0 0.0
    %160 = vmatpush2.msra.mxu0 0.0
    %161 = vmatprep.subr.mxu0 0.0
    %162 = vmatpush2.msra.mxu0 0.0
    %163 = vmatprep.subr.mxu0 0.0
    %164 = vmatpush2.msra.mxu0 0.0
    %165 = vmatprep.subr.mxu0 0.0
    %166 = vmatpush2.msra.mxu0 0.0
    %167 = vmatprep.subr.mxu0 0.0
    %168 = vmatpush2.msra.mxu0 0.0
    %169 = vmatprep.subr.mxu0 0.0
    %170 = vmatpush2.msra.mxu0 0.0
    %171 = vmatprep.mubr.f32.mxu0 0.0
    %172 = vmatmul.mubr.f32.gmra.mxu0 %v102
    %v173 = vpop.f32.mrf.mxu0
    %v174 = vadd.f32 %v98, %v173
    %v175 = vpop.f32.mrf.mxu0
    %176 = vmatprep.mubr.f32.mxu0 0.0
    %177 = vmatmul.mubr.f32.gmra.mxu0 %v105
    %v178 = vpop.f32.mrf.mxu0
    %v179 = vadd.f32 %v98, %v178
    %v180 = vpop.f32.mrf.mxu0
    %181 = vdwg.mxu0
    %v182 = vmax.f32 %v174, 0.0
    %v183 = vmax.f32 %v179, 0.0
    %v184 = vsel %vm100, %v182, 0.0
    %185 = vadd.xlane.f32.xlu0 %v184
    %v186 = vpop.xlane.xlu0 %185
    %v187 = vsel %vm100, %v183, 0.0
    %188 = vadd.xlane.f32.xlu0 %v187
    %v189 = vpop.xlane.xlu0 %188
    %v190 = vrcp.pop 32.0
    %v191 = vmul.f32 %v186, %v190
    %v192 = vmul.f32 %v189, %v190
    %v193 = vsub.f32 %v182, %v191
    %v194 = vsub.f32 %v183, %v192
    %v195 = vmul.f32 %v193, %v193
    %v196 = vmul.f32 %v194, %v194
    %v197 = vsel %vm100, %v195, 0.0
    %198 = vadd.xlane.f32.xlu0 %v197
    %v199 = vpop.xlane.xlu0 %198
    %v200 = vsel %vm100, %v196, 0.0
    %201 = vadd.xlane.f32.xlu0 %v200
    %v202 = vpop.xlane.xlu0 %201
    %v203 = vmul.f32 %v199, %v190
    %v204 = vmul.f32 %v202, %v190
    %v205 = vadd.f32 %v203, 1e-05
    %v206 = vadd.f32 %v204, 1e-05
    %v207 = vrsqrt.pop %v205
    %v208 = vrsqrt.pop %v206
    %v209 = vmul.f32 %v193, %v207
    %v210 = vmul.f32 %v194, %v208
    %v211 = vld [vmem:[%s4] sm:$0x1]
    %v213 = vlaneseq
    %v214 = vshrl.u32 %v213, 7
    %v215 = vsub.s32 0, %v214
    %v216 = vrot.slane %v211, %v215
    %v218 = vmul.f32 %v209, %v216
    %v219 = vmul.f32 %v210, %v216
    %v220 = vld [vmem:[%s5] sm:$0x1]
    %v222 = vlaneseq
    %v223 = vshrl.u32 %v222, 7
    %v224 = vsub.s32 0, %v223
    %v225 = vrot.slane %v220, %v224
    %v227 = vadd.f32 %v218, %v225
    %v228 = vadd.f32 %v219, %v225
    %v229 = vld [vmem:[#allocation7] sm:$0xff]
    %v230 = vld [vmem:[#allocation7 + $0x8] sm:$0xff]
    %v231 = vld [vmem:[#allocation7 + $0x10] sm:$0xff]
    %v232 = vld [vmem:[#allocation7 + $0x18] sm:$0xff]
    %v233 = vld [vmem:[%s7] sm:$0x1]
    %v235 = vlaneseq
    %v236 = vshrl.u32 %v235, 7
    %v237 = vsub.s32 0, %v236
    %v238 = vrot.slane %v233, %v237
    %v241 = vsel %vm100, %v227, 0
    %v244 = vsel %vm100, %v228, 0
    %246 = vmatprep.subr.mxu0 0.0
    %247 = vmatpush1.msra.mxu0 0.0
    %248 = vmatprep.subr.mxu0 0.0
    %249 = vmatpush1.msra.mxu0 0.0
    %250 = vmatprep.subr.mxu0 0.0
    %251 = vmatpush1.msra.mxu0 0.0
    %252 = vmatprep.subr.mxu0 0.0
    %253 = vmatpush1.msra.mxu0 0.0
    %254 = vmatprep.subr.mxu0 0.0
    %255 = vmatpush1.msra.mxu0 0.0
    %256 = vmatprep.subr.mxu0 0.0
    %257 = vmatpush1.msra.mxu0 0.0
    %258 = vmatprep.subr.mxu0 0.0
    %259 = vmatpush1.msra.mxu0 0.0
    %260 = vmatprep.subr.mxu0 0.0
    %261 = vmatpush1.msra.mxu0 0.0
    %262 = vmatprep.subr.mxu0 0.0
    %263 = vmatpush1.msra.mxu0 0.0
    %264 = vmatprep.subr.mxu0 0.0
    %265 = vmatpush1.msra.mxu0 0.0
    %266 = vmatprep.subr.mxu0 0.0
    %267 = vmatpush1.msra.mxu0 0.0
    %268 = vmatprep.subr.mxu0 0.0
    %269 = vmatpush1.msra.mxu0 0.0
    %270 = vmatprep.subr.mxu0 0.0
    %271 = vmatpush1.msra.mxu0 %v232
    %272 = vmatprep.subr.mxu0 0.0
    %273 = vmatpush1.msra.mxu0 %v231
    %274 = vmatprep.subr.mxu0 0.0
    %275 = vmatpush1.msra.mxu0 %v230
    %276 = vmatprep.subr.mxu0 0.0
    %277 = vmatpush1.msra.mxu0 %v229
    %278 = vmatprep.subr.mxu0 0.0
    %279 = vmatpush2.msra.mxu0 0.0
    %280 = vmatprep.subr.mxu0 0.0
    %281 = vmatpush2.msra.mxu0 0.0
    %282 = vmatprep.subr.mxu0 0.0
    %283 = vmatpush2.msra.mxu0 0.0
    %284 = vmatprep.subr.mxu0 0.0
    %285 = vmatpush2.msra.mxu0 0.0
    %286 = vmatprep.subr.mxu0 0.0
    %287 = vmatpush2.msra.mxu0 0.0
    %288 = vmatprep.subr.mxu0 0.0
    %289 = vmatpush2.msra.mxu0 0.0
    %290 = vmatprep.subr.mxu0 0.0
    %291 = vmatpush2.msra.mxu0 0.0
    %292 = vmatprep.subr.mxu0 0.0
    %293 = vmatpush2.msra.mxu0 0.0
    %294 = vmatprep.subr.mxu0 0.0
    %295 = vmatpush2.msra.mxu0 0.0
    %296 = vmatprep.subr.mxu0 0.0
    %297 = vmatpush2.msra.mxu0 0.0
    %298 = vmatprep.subr.mxu0 0.0
    %299 = vmatpush2.msra.mxu0 0.0
    %300 = vmatprep.subr.mxu0 0.0
    %301 = vmatpush2.msra.mxu0 0.0
    %302 = vmatprep.subr.mxu0 0.0
    %303 = vmatpush2.msra.mxu0 0.0
    %304 = vmatprep.subr.mxu0 0.0
    %305 = vmatpush2.msra.mxu0 0.0
    %306 = vmatprep.subr.mxu0 0.0
    %307 = vmatpush2.msra.mxu0 0.0
    %308 = vmatprep.subr.mxu0 0.0
    %309 = vmatpush2.msra.mxu0 0.0
    %310 = vmatprep.mubr.f32.mxu0 0.0
    %311 = vmatmul.mubr.f32.gmra.mxu0 %v241
    %v312 = vpop.f32.mrf.mxu0
    %v313 = vadd.f32 %v238, %v312
    %v314 = vpop.f32.mrf.mxu0
    %315 = vmatprep.mubr.f32.mxu0 0.0
    %316 = vmatmul.mubr.f32.gmra.mxu0 %v244
    %v317 = vpop.f32.mrf.mxu0
    %v318 = vadd.f32 %v238, %v317
    %v319 = vpop.f32.mrf.mxu0
    %320 = vdwg.mxu0
    %v321 = vld [vmem:[#allocation9] sm:$0xff]
    %v322 = vld [vmem:[#allocation9 + $0x8] sm:$0xff]
    %v323 = vld [vmem:[#allocation9 + $0x10] sm:$0xff]
    %v324 = vld [vmem:[#allocation9 + $0x18] sm:$0xff]
    %v325 = vld [vmem:[%s9] sm:$0x1]
    %v326 = vld [vmem:[%s1] sm:$0x3]
    %v328 = vlaneseq
    %v329 = vshrl.u32 %v328, 7
    %v330 = vsub.s32 0, %v329
    %v331 = vrot.slane %v325, %v330
    %v334 = vsel %vm100, %v326, 0
    %336 = vmatprep.subr.mxu0 0.0
    %337 = vmatpush1.msra.mxu0 0.0
    %338 = vmatprep.subr.mxu0 0.0
    %339 = vmatpush1.msra.mxu0 0.0
    %340 = vmatprep.subr.mxu0 0.0
    %341 = vmatpush1.msra.mxu0 0.0
    %342 = vmatprep.subr.mxu0 0.0
    %343 = vmatpush1.msra.mxu0 0.0
    %344 = vmatprep.subr.mxu0 0.0
    %345 = vmatpush1.msra.mxu0 0.0
    %346 = vmatprep.subr.mxu0 0.0
    %347 = vmatpush1.msra.mxu0 0.0
    %348 = vmatprep.subr.mxu0 0.0
    %349 = vmatpush1.msra.mxu0 0.0
    %350 = vmatprep.subr.mxu0 0.0
    %351 = vmatpush1.msra.mxu0 0.0
    %352 = vmatprep.subr.mxu0 0.0
    %353 = vmatpush1.msra.mxu0 0.0
    %354 = vmatprep.subr.mxu0 0.0
    %355 = vmatpush1.msra.mxu0 0.0
    %356 = vmatprep.subr.mxu0 0.0
    %357 = vmatpush1.msra.mxu0 0.0
    %358 = vmatprep.subr.mxu0 0.0
    %359 = vmatpush1.msra.mxu0 0.0
    %360 = vmatprep.subr.mxu0 0.0
    %361 = vmatpush1.msra.mxu0 %v324
    %362 = vmatprep.subr.mxu0 0.0
    %363 = vmatpush1.msra.mxu0 %v323
    %364 = vmatprep.subr.mxu0 0.0
    %365 = vmatpush1.msra.mxu0 %v322
    %366 = vmatprep.subr.mxu0 0.0
    %367 = vmatpush1.msra.mxu0 %v321
    %368 = vmatprep.subr.mxu0 0.0
    %369 = vmatpush2.msra.mxu0 0.0
    %370 = vmatprep.subr.mxu0 0.0
    %371 = vmatpush2.msra.mxu0 0.0
    %372 = vmatprep.subr.mxu0 0.0
    %373 = vmatpush2.msra.mxu0 0.0
    %374 = vmatprep.subr.mxu0 0.0
    %375 = vmatpush2.msra.mxu0 0.0
    %376 = vmatprep.subr.mxu0 0.0
    %377 = vmatpush2.msra.mxu0 0.0
    %378 = vmatprep.subr.mxu0 0.0
    %379 = vmatpush2.msra.mxu0 0.0
    %380 = vmatprep.subr.mxu0 0.0
    %381 = vmatpush2.msra.mxu0 0.0
    %382 = vmatprep.subr.mxu0 0.0
    %383 = vmatpush2.msra.mxu0 0.0
    %384 = vmatprep.subr.mxu0 0.0
    %385 = vmatpush2.msra.mxu0 0.0
    %386 = vmatprep.subr.mxu0 0.0
    %387 = vmatpush2.msra.mxu0 0.0
    %388 = vmatprep.subr.mxu0 0.0
    %389 = vmatpush2.msra.mxu0 0.0
    %390 = vmatprep.subr.mxu0 0.0
    %391 = vmatpush2.msra.mxu0 0.0
    %392 = vmatprep.subr.mxu0 0.0
    %393 = vmatpush2.msra.mxu0 0.0
    %394 = vmatprep.subr.mxu0 0.0
    %395 = vmatpush2.msra.mxu0 0.0
    %396 = vmatprep.subr.mxu0 0.0
    %397 = vmatpush2.msra.mxu0 0.0
    %398 = vmatprep.subr.mxu0 0.0
    %399 = vmatpush2.msra.mxu0 0.0
    %400 = vmatprep.mubr.f32.mxu0 0.0
    %401 = vmatmul.mubr.f32.gmra.mxu0 %v334
    %v402 = vpop.f32.mrf.mxu0
    %v403 = vadd.f32 %v331, %v402
    %v404 = vpop.f32.mrf.mxu0
    %405 = vdwg.mxu0
    %v406 = vadd.f32 %v313, %v403
    %v407 = vxor.u32 %v406, 2147483648
    %v408 = vmul.f32 %v407, 1.442695
    %v409 = vpow.pop %v408
    %v410 = vadd.f32 %v409, 1.0
    %v411 = vrcp.pop %v410
    %v412 = vmul.f32 1.0, %v411
    %414 = vrot.lane.b32.xlu0 %v403, 64
    %v415 = vpop.permute.xlu0 %414
    %v417 = vmul.f32 %v412, %v415
    %419 = vrot.lane.b32.xlu0 %v417, 64
    %v420 = vpop.permute.xlu0 %419
    %v422 = vadd.f32 %v313, %v420
    %v423 = vtanh.pop %v422
    %v424 = vsub.f32 1.0, %v412
    %426 = vrot.lane.b32.xlu0 %v423, 96
    %v427 = vpop.permute.xlu0 %426
    %v429 = vmul.f32 %v424, %v427
    %430 = vrot.lane.b32.xlu0 %v326, 32
    %v431 = vpop.permute.xlu0 %430
    %v433 = vmul.f32 %v412, %v431
    %v434 = vadd.f32 %v429, %v433
    %436 = vrot.lane.b32.xlu0 %v434, 96
    %v437 = vpop.permute.xlu0 %436
    %vm439 = vcmask 254976
    %440 = vst.msk [vmem:[#allocation2] sm:$0x3] %vm439, %v437
    %v441 = vsel %vm100, %v437, 0
    %443 = vmatprep.subr.mxu0 0.0
    %444 = vmatpush1.msra.mxu0 0.0
    %445 = vmatprep.subr.mxu0 0.0
    %446 = vmatpush1.msra.mxu0 0.0
    %447 = vmatprep.subr.mxu0 0.0
    %448 = vmatpush1.msra.mxu0 0.0
    %449 = vmatprep.subr.mxu0 0.0
    %450 = vmatpush1.msra.mxu0 0.0
    %451 = vmatprep.subr.mxu0 0.0
    %452 = vmatpush1.msra.mxu0 0.0
    %453 = vmatprep.subr.mxu0 0.0
    %454 = vmatpush1.msra.mxu0 0.0
    %455 = vmatprep.subr.mxu0 0.0
    %456 = vmatpush1.msra.mxu0 0.0
    %457 = vmatprep.subr.mxu0 0.0
    %458 = vmatpush1.msra.mxu0 0.0
    %459 = vmatprep.subr.mxu0 0.0
    %460 = vmatpush1.msra.mxu0 0.0
    %461 = vmatprep.subr.mxu0 0.0
    %462 = vmatpush1.msra.mxu0 0.0
    %463 = vmatprep.subr.mxu0 0.0
    %464 = vmatpush1.msra.mxu0 0.0
    %465 = vmatprep.subr.mxu0 0.0
    %466 = vmatpush1.msra.mxu0 0.0
    %467 = vmatprep.subr.mxu0 0.0
    %468 = vmatpush1.msra.mxu0 %v324
    %469 = vmatprep.subr.mxu0 0.0
    %470 = vmatpush1.msra.mxu0 %v323
    %471 = vmatprep.subr.mxu0 0.0
    %472 = vmatpush1.msra.mxu0 %v322
    %473 = vmatprep.subr.mxu0 0.0
    %474 = vmatpush1.msra.mxu0 %v321
    %475 = vmatprep.subr.mxu0 0.0
    %476 = vmatpush2.msra.mxu0 0.0
    %477 = vmatprep.subr.mxu0 0.0
    %478 = vmatpush2.msra.mxu0 0.0
    %479 = vmatprep.subr.mxu0 0.0
    %480 = vmatpush2.msra.mxu0 0.0
    %481 = vmatprep.subr.mxu0 0.0
    %482 = vmatpush2.msra.mxu0 0.0
    %483 = vmatprep.subr.mxu0 0.0
    %484 = vmatpush2.msra.mxu0 0.0
    %485 = vmatprep.subr.mxu0 0.0
    %486 = vmatpush2.msra.mxu0 0.0
    %487 = vmatprep.subr.mxu0 0.0
    %488 = vmatpush2.msra.mxu0 0.0
    %489 = vmatprep.subr.mxu0 0.0
    %490 = vmatpush2.msra.mxu0 0.0
    %491 = vmatprep.subr.mxu0 0.0
    %492 = vmatpush2.msra.mxu0 0.0
    %493 = vmatprep.subr.mxu0 0.0
    %494 = vmatpush2.msra.mxu0 0.0
    %495 = vmatprep.subr.mxu0 0.0
    %496 = vmatpush2.msra.mxu0 0.0
    %497 = vmatprep.subr.mxu0 0.0
    %498 = vmatpush2.msra.mxu0 0.0
    %499 = vmatprep.subr.mxu0 0.0
    %500 = vmatpush2.msra.mxu0 0.0
    %501 = vmatprep.subr.mxu0 0.0
    %502 = vmatpush2.msra.mxu0 0.0
    %503 = vmatprep.subr.mxu0 0.0
    %504 = vmatpush2.msra.mxu0 0.0
    %505 = vmatprep.subr.mxu0 0.0
    %506 = vmatpush2.msra.mxu0 0.0
    %507 = vmatprep.mubr.f32.mxu0 0.0
    %508 = vmatmul.mubr.f32.gmra.mxu0 %v441
    %v509 = vpop.f32.mrf.mxu0
    %v510 = vadd.f32 %v331, %v509
    %v511 = vpop.f32.mrf.mxu0
    %512 = vdwg.mxu0
    %v514 = vrot.slane %v510, 6
    %v516 = vadd.f32 %v313, %v514
    %v517 = vxor.u32 %v516, 2147483648
    %v518 = vmul.f32 %v517, 1.442695
    %v519 = vpow.pop %v518
    %v520 = vadd.f32 %v519, 1.0
    %v521 = vrcp.pop %v520
    %v522 = vmul.f32 1.0, %v521
    %523 = vrot.lane.b32.xlu0 %v514, 64
    %v524 = vpop.permute.xlu0 %523
    %v526 = vmul.f32 %v522, %v524
    %528 = vrot.lane.b32.xlu0 %v526, 64
    %v529 = vpop.permute.xlu0 %528
    %v531 = vadd.f32 %v313, %v529
    %v532 = vtanh.pop %v531
    %v533 = vsub.f32 1.0, %v522
    %535 = vrot.lane.b32.xlu0 %v532, 96
    %v536 = vpop.permute.xlu0 %535
    %v538 = vmul.f32 %v533, %v536
    %v539 = vrot.slane %v434, 6
    %v541 = vmul.f32 %v522, %v539
    %v542 = vadd.f32 %v538, %v541
    %544 = vrot.lane.b32.xlu0 %v542, 96
    %v545 = vpop.permute.xlu0 %544
    %vm547 = vcmask 257026
    %548 = vst.msk [vmem:[#allocation2] sm:$0xc] %vm547, %v545
    %v549 = vrot.slane %v542, 2
    %550 = vrot.lane.b32.xlu0 %v549, 96
    %v551 = vpop.permute.xlu0 %550
    %v552 = vsel %vm100, %v551, 0
    %554 = vmatprep.subr.mxu0 0.0
    %555 = vmatpush1.msra.mxu0 0.0
    %556 = vmatprep.subr.mxu0 0.0
    %557 = vmatpush1.msra.mxu0 0.0
    %558 = vmatprep.subr.mxu0 0.0
    %559 = vmatpush1.msra.mxu0 0.0
    %560 = vmatprep.subr.mxu0 0.0
    %561 = vmatpush1.msra.mxu0 0.0
    %562 = vmatprep.subr.mxu0 0.0
    %563 = vmatpush1.msra.mxu0 0.0
    %564 = vmatprep.subr.mxu0 0.0
    %565 = vmatpush1.msra.mxu0 0.0
    %566 = vmatprep.subr.mxu0 0.0
    %567 = vmatpush1.msra.mxu0 0.0
    %568 = vmatprep.subr.mxu0 0.0
    %569 = vmatpush1.msra.mxu0 0.0
    %570 = vmatprep.subr.mxu0 0.0
    %571 = vmatpush1.msra.mxu0 0.0
    %572 = vmatprep.subr.mxu0 0.0
    %573 = vmatpush1.msra.mxu0 0.0
    %574 = vmatprep.subr.mxu0 0.0
    %575 = vmatpush1.msra.mxu0 0.0
    %576 = vmatprep.subr.mxu0 0.0
    %577 = vmatpush1.msra.mxu0 0.0
    %578 = vmatprep.subr.mxu0 0.0
    %579 = vmatpush1.msra.mxu0 %v324
    %580 = vmatprep.subr.mxu0 0.0
    %581 = vmatpush1.msra.mxu0 %v323
    %582 = vmatprep.subr.mxu0 0.0
    %583 = vmatpush1.msra.mxu0 %v322
    %584 = vmatprep.subr.mxu0 0.0
    %585 = vmatpush1.msra.mxu0 %v321
    %586 = vmatprep.subr.mxu0 0.0
    %587 = vmatpush2.msra.mxu0 0.0
    %588 = vmatprep.subr.mxu0 0.0
    %589 = vmatpush2.msra.mxu0 0.0
    %590 = vmatprep.subr.mxu0 0.0
    %591 = vmatpush2.msra.mxu0 0.0
    %592 = vmatprep.subr.mxu0 0.0
    %593 = vmatpush2.msra.mxu0 0.0
    %594 = vmatprep.subr.mxu0 0.0
    %595 = vmatpush2.msra.mxu0 0.0
    %596 = vmatprep.subr.mxu0 0.0
    %597 = vmatpush2.msra.mxu0 0.0
    %598 = vmatprep.subr.mxu0 0.0
    %599 = vmatpush2.msra.mxu0 0.0
    %600 = vmatprep.subr.mxu0 0.0
    %601 = vmatpush2.msra.mxu0 0.0
    %602 = vmatprep.subr.mxu0 0.0
    %603 = vmatpush2.msra.mxu0 0.0
    %604 = vmatprep.subr.mxu0 0.0
    %605 = vmatpush2.msra.mxu0 0.0
    %606 = vmatprep.subr.mxu0 0.0
    %607 = vmatpush2.msra.mxu0 0.0
    %608 = vmatprep.subr.mxu0 0.0
    %609 = vmatpush2.msra.mxu0 0.0
    %610 = vmatprep.subr.mxu0 0.0
    %611 = vmatpush2.msra.mxu0 0.0
    %612 = vmatprep.subr.mxu0 0.0
    %613 = vmatpush2.msra.mxu0 0.0
    %614 = vmatprep.subr.mxu0 0.0
    %615 = vmatpush2.msra.mxu0 0.0
    %616 = vmatprep.subr.mxu0 0.0
    %617 = vmatpush2.msra.mxu0 0.0
    %618 = vmatprep.mubr.f32.mxu0 0.0
    %619 = vmatmul.mubr.f32.gmra.mxu0 %v552
    %v620 = vpop.f32.mrf.mxu0
    %v621 = vadd.f32 %v331, %v620
    %v622 = vpop.f32.mrf.mxu0
    %623 = vdwg.mxu0
    %v625 = vrot.slane %v621, 4
    %v627 = vadd.f32 %v313, %v625
    %v628 = vxor.u32 %v627, 2147483648
    %v629 = vmul.f32 %v628, 1.442695
    %v630 = vpow.pop %v629
    %v631 = vadd.f32 %v630, 1.0
    %v632 = vrcp.pop %v631
    %v633 = vmul.f32 1.0, %v632
    %634 = vrot.lane.b32.xlu0 %v625, 64
    %v635 = vpop.permute.xlu0 %634
    %v637 = vmul.f32 %v633, %v635
    %639 = vrot.lane.b32.xlu0 %v637, 64
    %v640 = vpop.permute.xlu0 %639
    %v642 = vadd.f32 %v313, %v640
    %v643 = vtanh.pop %v642
    %v644 = vsub.f32 1.0, %v633
    %646 = vrot.lane.b32.xlu0 %v643, 96
    %v647 = vpop.permute.xlu0 %646
    %v649 = vmul.f32 %v644, %v647
    %v650 = vrot.slane %v542, 6
    %v652 = vmul.f32 %v633, %v650
    %v653 = vadd.f32 %v649, %v652
    %655 = vrot.lane.b32.xlu0 %v653, 96
    %v656 = vpop.permute.xlu0 %655
    %vm658 = vcmask 259076
    %659 = vst.msk [vmem:[#allocation2] sm:$0x30] %vm658, %v656
    %v660 = vrot.slane %v653, 4
    %661 = vrot.lane.b32.xlu0 %v660, 96
    %v662 = vpop.permute.xlu0 %661
    %v663 = vsel %vm100, %v662, 0
    %665 = vmatprep.subr.mxu0 0.0
    %666 = vmatpush1.msra.mxu0 0.0
    %667 = vmatprep.subr.mxu0 0.0
    %668 = vmatpush1.msra.mxu0 0.0
    %669 = vmatprep.subr.mxu0 0.0
    %670 = vmatpush1.msra.mxu0 0.0
    %671 = vmatprep.subr.mxu0 0.0
    %672 = vmatpush1.msra.mxu0 0.0
    %673 = vmatprep.subr.mxu0 0.0
    %674 = vmatpush1.msra.mxu0 0.0
    %675 = vmatprep.subr.mxu0 0.0
    %676 = vmatpush1.msra.mxu0 0.0
    %677 = vmatprep.subr.mxu0 0.0
    %678 = vmatpush1.msra.mxu0 0.0
    %679 = vmatprep.subr.mxu0 0.0
    %680 = vmatpush1.msra.mxu0 0.0
    %681 = vmatprep.subr.mxu0 0.0
    %682 = vmatpush1.msra.mxu0 0.0
    %683 = vmatprep.subr.mxu0 0.0
    %684 = vmatpush1.msra.mxu0 0.0
    %685 = vmatprep.subr.mxu0 0.0
    %686 = vmatpush1.msra.mxu0 0.0
    %687 = vmatprep.subr.mxu0 0.0
    %688 = vmatpush1.msra.mxu0 0.0
    %689 = vmatprep.subr.mxu0 0.0
    %690 = vmatpush1.msra.mxu0 %v324
    %691 = vmatprep.subr.mxu0 0.0
    %692 = vmatpush1.msra.mxu0 %v323
    %693 = vmatprep.subr.mxu0 0.0
    %694 = vmatpush1.msra.mxu0 %v322
    %695 = vmatprep.subr.mxu0 0.0
    %696 = vmatpush1.msra.mxu0 %v321
    %697 = vmatprep.subr.mxu0 0.0
    %698 = vmatpush2.msra.mxu0 0.0
    %699 = vmatprep.subr.mxu0 0.0
    %700 = vmatpush2.msra.mxu0 0.0
    %701 = vmatprep.subr.mxu0 0.0
    %702 = vmatpush2.msra.mxu0 0.0
    %703 = vmatprep.subr.mxu0 0.0
    %704 = vmatpush2.msra.mxu0 0.0
    %705 = vmatprep.subr.mxu0 0.0
    %706 = vmatpush2.msra.mxu0 0.0
    %707 = vmatprep.subr.mxu0 0.0
    %708 = vmatpush2.msra.mxu0 0.0
    %709 = vmatprep.subr.mxu0 0.0
    %710 = vmatpush2.msra.mxu0 0.0
    %711 = vmatprep.subr.mxu0 0.0
    %712 = vmatpush2.msra.mxu0 0.0
    %713 = vmatprep.subr.mxu0 0.0
    %714 = vmatpush2.msra.mxu0 0.0
    %715 = vmatprep.subr.mxu0 0.0
    %716 = vmatpush2.msra.mxu0 0.0
    %717 = vmatprep.subr.mxu0 0.0
    %718 = vmatpush2.msra.mxu0 0.0
    %719 = vmatprep.subr.mxu0 0.0
    %720 = vmatpush2.msra.mxu0 0.0
    %721 = vmatprep.subr.mxu0 0.0
    %722 = vmatpush2.msra.mxu0 0.0
    %723 = vmatprep.subr.mxu0 0.0
    %724 = vmatpush2.msra.mxu0 0.0
    %725 = vmatprep.subr.mxu0 0.0
    %726 = vmatpush2.msra.mxu0 0.0
    %727 = vmatprep.subr.mxu0 0.0
    %728 = vmatpush2.msra.mxu0 0.0
    %729 = vmatprep.mubr.f32.mxu0 0.0
    %730 = vmatmul.mubr.f32.gmra.mxu0 %v663
    %v731 = vpop.f32.mrf.mxu0
    %v732 = vadd.f32 %v331, %v731
    %v733 = vpop.f32.mrf.mxu0
    %734 = vdwg.mxu0
    %v736 = vrot.slane %v732, 2
    %v738 = vadd.f32 %v313, %v736
    %v739 = vxor.u32 %v738, 2147483648
    %v740 = vmul.f32 %v739, 1.442695
    %v741 = vpow.pop %v740
    %v742 = vadd.f32 %v741, 1.0
    %v743 = vrcp.pop %v742
    %v744 = vmul.f32 1.0, %v743
    %745 = vrot.lane.b32.xlu0 %v736, 64
    %v746 = vpop.permute.xlu0 %745
    %v748 = vmul.f32 %v744, %v746
    %750 = vrot.lane.b32.xlu0 %v748, 64
    %v751 = vpop.permute.xlu0 %750
    %v753 = vadd.f32 %v313, %v751
    %v754 = vtanh.pop %v753
    %v755 = vsub.f32 1.0, %v744
    %757 = vrot.lane.b32.xlu0 %v754, 96
    %v758 = vpop.permute.xlu0 %757
    %v760 = vmul.f32 %v755, %v758
    %v761 = vrot.slane %v653, 6
    %v763 = vmul.f32 %v744, %v761
    %v764 = vadd.f32 %v760, %v763
    %766 = vrot.lane.b32.xlu0 %v764, 96
    %v767 = vpop.permute.xlu0 %766
    %vm769 = vcmask 261126
    %770 = vst.msk [vmem:[#allocation2] sm:$0xc0] %vm769, %v767
    %v771 = vrot.slane %v764, 6
    %772 = vrot.lane.b32.xlu0 %v771, 96
    %v773 = vpop.permute.xlu0 %772
    %v774 = vsel %vm100, %v773, 0
    %776 = vmatprep.subr.mxu0 0.0
    %777 = vmatpush1.msra.mxu0 0.0
    %778 = vmatprep.subr.mxu0 0.0
    %779 = vmatpush1.msra.mxu0 0.0
    %780 = vmatprep.subr.mxu0 0.0
    %781 = vmatpush1.msra.mxu0 0.0
    %782 = vmatprep.subr.mxu0 0.0
    %783 = vmatpush1.msra.mxu0 0.0
    %784 = vmatprep.subr.mxu0 0.0
    %785 = vmatpush1.msra.mxu0 0.0
    %786 = vmatprep.subr.mxu0 0.0
    %787 = vmatpush1.msra.mxu0 0.0
    %788 = vmatprep.subr.mxu0 0.0
    %789 = vmatpush1.msra.mxu0 0.0
    %790 = vmatprep.subr.mxu0 0.0
    %791 = vmatpush1.msra.mxu0 0.0
    %792 = vmatprep.subr.mxu0 0.0
    %793 = vmatpush1.msra.mxu0 0.0
    %794 = vmatprep.subr.mxu0 0.0
    %795 = vmatpush1.msra.mxu0 0.0
    %796 = vmatprep.subr.mxu0 0.0
    %797 = vmatpush1.msra.mxu0 0.0
    %798 = vmatprep.subr.mxu0 0.0
    %799 = vmatpush1.msra.mxu0 0.0
    %800 = vmatprep.subr.mxu0 0.0
    %801 = vmatpush1.msra.mxu0 %v324
    %802 = vmatprep.subr.mxu0 0.0
    %803 = vmatpush1.msra.mxu0 %v323
    %804 = vmatprep.subr.mxu0 0.0
    %805 = vmatpush1.msra.mxu0 %v322
    %806 = vmatprep.subr.mxu0 0.0
    %807 = vmatpush1.msra.mxu0 %v321
    %808 = vmatprep.subr.mxu0 0.0
    %809 = vmatpush2.msra.mxu0 0.0
    %810 = vmatprep.subr.mxu0 0.0
    %811 = vmatpush2.msra.mxu0 0.0
    %812 = vmatprep.subr.mxu0 0.0
    %813 = vmatpush2.msra.mxu0 0.0
    %814 = vmatprep.subr.mxu0 0.0
    %815 = vmatpush2.msra.mxu0 0.0
    %816 = vmatprep.subr.mxu0 0.0
    %817 = vmatpush2.msra.mxu0 0.0
    %818 = vmatprep.subr.mxu0 0.0
    %819 = vmatpush2.msra.mxu0 0.0
    %820 = vmatprep.subr.mxu0 0.0
    %821 = vmatpush2.msra.mxu0 0.0
    %822 = vmatprep.subr.mxu0 0.0
    %823 = vmatpush2.msra.mxu0 0.0
    %824 = vmatprep.subr.mxu0 0.0
    %825 = vmatpush2.msra.mxu0 0.0
    %826 = vmatprep.subr.mxu0 0.0
    %827 = vmatpush2.msra.mxu0 0.0
    %828 = vmatprep.subr.mxu0 0.0
    %829 = vmatpush2.msra.mxu0 0.0
    %830 = vmatprep.subr.mxu0 0.0
    %831 = vmatpush2.msra.mxu0 0.0
    %832 = vmatprep.subr.mxu0 0.0
    %833 = vmatpush2.msra.mxu0 0.0
    %834 = vmatprep.subr.mxu0 0.0
    %835 = vmatpush2.msra.mxu0 0.0
    %836 = vmatprep.subr.mxu0 0.0
    %837 = vmatpush2.msra.mxu0 0.0
    %838 = vmatprep.subr.mxu0 0.0
    %839 = vmatpush2.msra.mxu0 0.0
    %840 = vmatprep.mubr.f32.mxu0 0.0
    %841 = vmatmul.mubr.f32.gmra.mxu0 %v774
    %v842 = vpop.f32.mrf.mxu0
    %v843 = vadd.f32 %v331, %v842
    %v844 = vpop.f32.mrf.mxu0
    %845 = vdwg.mxu0
    %v846 = vadd.f32 %v318, %v843
    %v847 = vxor.u32 %v846, 2147483648
    %v848 = vmul.f32 %v847, 1.442695
    %v849 = vpow.pop %v848
    %v850 = vadd.f32 %v849, 1.0
    %v851 = vrcp.pop %v850
    %v852 = vmul.f32 1.0, %v851
    %854 = vrot.lane.b32.xlu0 %v843, 64
    %v855 = vpop.permute.xlu0 %854
    %v857 = vmul.f32 %v852, %v855
    %859 = vrot.lane.b32.xlu0 %v857, 64
    %v860 = vpop.permute.xlu0 %859
    %v862 = vadd.f32 %v318, %v860
    %v863 = vtanh.pop %v862
    %v864 = vsub.f32 1.0, %v852
    %866 = vrot.lane.b32.xlu0 %v863, 96
    %v867 = vpop.permute.xlu0 %866
    %v869 = vmul.f32 %v864, %v867
    %v871 = vmul.f32 %v852, %v771
    %v872 = vadd.f32 %v869, %v871
    %874 = vrot.lane.b32.xlu0 %v872, 96
    %v875 = vpop.permute.xlu0 %874
    %877 = vst.msk [vmem:[#allocation2 + $0x8] sm:$0x3] %vm439, %v875
    %v878 = vsel %vm100, %v875, 0
    %880 = vmatprep.subr.mxu0 0.0
    %881 = vmatpush1.msra.mxu0 0.0
    %882 = vmatprep.subr.mxu0 0.0
    %883 = vmatpush1.msra.mxu0 0.0
    %884 = vmatprep.subr.mxu0 0.0
    %885 = vmatpush1.msra.mxu0 0.0
    %886 = vmatprep.subr.mxu0 0.0
    %887 = vmatpush1.msra.mxu0 0.0
    %888 = vmatprep.subr.mxu0 0.0
    %889 = vmatpush1.msra.mxu0 0.0
    %890 = vmatprep.subr.mxu0 0.0
    %891 = vmatpush1.msra.mxu0 0.0
    %892 = vmatprep.subr.mxu0 0.0
    %893 = vmatpush1.msra.mxu0 0.0
    %894 = vmatprep.subr.mxu0 0.0
    %895 = vmatpush1.msra.mxu0 0.0
    %896 = vmatprep.subr.mxu0 0.0
    %897 = vmatpush1.msra.mxu0 0.0
    %898 = vmatprep.subr.mxu0 0.0
    %899 = vmatpush1.msra.mxu0 0.0
    %900 = vmatprep.subr.mxu0 0.0
    %901 = vmatpush1.msra.mxu0 0.0
    %902 = vmatprep.subr.mxu0 0.0
    %903 = vmatpush1.msra.mxu0 0.0
    %904 = vmatprep.subr.mxu0 0.0
    %905 = vmatpush1.msra.mxu0 %v324
    %906 = vmatprep.subr.mxu0 0.0
    %907 = vmatpush1.msra.mxu0 %v323
    %908 = vmatprep.subr.mxu0 0.0
    %909 = vmatpush1.msra.mxu0 %v322
    %910 = vmatprep.subr.mxu0 0.0
    %911 = vmatpush1.msra.mxu0 %v321
    %912 = vmatprep.subr.mxu0 0.0
    %913 = vmatpush2.msra.mxu0 0.0
    %914 = vmatprep.subr.mxu0 0.0
    %915 = vmatpush2.msra.mxu0 0.0
    %916 = vmatprep.subr.mxu0 0.0
    %917 = vmatpush2.msra.mxu0 0.0
    %918 = vmatprep.subr.mxu0 0.0
    %919 = vmatpush2.msra.mxu0 0.0
    %920 = vmatprep.subr.mxu0 0.0
    %921 = vmatpush2.msra.mxu0 0.0
    %922 = vmatprep.subr.mxu0 0.0
    %923 = vmatpush2.msra.mxu0 0.0
    %924 = vmatprep.subr.mxu0 0.0
    %925 = vmatpush2.msra.mxu0 0.0
    %926 = vmatprep.subr.mxu0 0.0
    %927 = vmatpush2.msra.mxu0 0.0
    %928 = vmatprep.subr.mxu0 0.0
    %929 = vmatpush2.msra.mxu0 0.0
    %930 = vmatprep.subr.mxu0 0.0
    %931 = vmatpush2.msra.mxu0 0.0
    %932 = vmatprep.subr.mxu0 0.0
    %933 = vmatpush2.msra.mxu0 0.0
    %934 = vmatprep.subr.mxu0 0.0
    %935 = vmatpush2.msra.mxu0 0.0
    %936 = vmatprep.subr.mxu0 0.0
    %937 = vmatpush2.msra.mxu0 0.0
    %938 = vmatprep.subr.mxu0 0.0
    %939 = vmatpush2.msra.mxu0 0.0
    %940 = vmatprep.subr.mxu0 0.0
    %941 = vmatpush2.msra.mxu0 0.0
    %942 = vmatprep.subr.mxu0 0.0
    %943 = vmatpush2.msra.mxu0 0.0
    %944 = vmatprep.mubr.f32.mxu0 0.0
    %945 = vmatmul.mubr.f32.gmra.mxu0 %v878
    %v946 = vpop.f32.mrf.mxu0
    %v947 = vadd.f32 %v331, %v946
    %v948 = vpop.f32.mrf.mxu0
    %949 = vdwg.mxu0
    %v951 = vrot.slane %v947, 6
    %v953 = vadd.f32 %v318, %v951
    %v954 = vxor.u32 %v953, 2147483648
    %v955 = vmul.f32 %v954, 1.442695
    %v956 = vpow.pop %v955
    %v957 = vadd.f32 %v956, 1.0
    %v958 = vrcp.pop %v957
    %v959 = vmul.f32 1.0, %v958
    %960 = vrot.lane.b32.xlu0 %v951, 64
    %v961 = vpop.permute.xlu0 %960
    %v963 = vmul.f32 %v959, %v961
    %965 = vrot.lane.b32.xlu0 %v963, 64
    %v966 = vpop.permute.xlu0 %965
    %v968 = vadd.f32 %v318, %v966
    %v969 = vtanh.pop %v968
    %v970 = vsub.f32 1.0, %v959
    %972 = vrot.lane.b32.xlu0 %v969, 96
    %v973 = vpop.permute.xlu0 %972
    %v975 = vmul.f32 %v970, %v973
    %v976 = vrot.slane %v872, 6
    %v978 = vmul.f32 %v959, %v976
    %v979 = vadd.f32 %v975, %v978
    %981 = vrot.lane.b32.xlu0 %v979, 96
    %v982 = vpop.permute.xlu0 %981
    %984 = vst.msk [vmem:[#allocation2 + $0x8] sm:$0xc] %vm547, %v982
    %v985 = vrot.slane %v979, 2
    %986 = vrot.lane.b32.xlu0 %v985, 96
    %v987 = vpop.permute.xlu0 %986
    %v988 = vsel %vm100, %v987, 0
    %990 = vmatprep.subr.mxu0 0.0
    %991 = vmatpush1.msra.mxu0 0.0
    %992 = vmatprep.subr.mxu0 0.0
    %993 = vmatpush1.msra.mxu0 0.0
    %994 = vmatprep.subr.mxu0 0.0
    %995 = vmatpush1.msra.mxu0 0.0
    %996 = vmatprep.subr.mxu0 0.0
    %997 = vmatpush1.msra.mxu0 0.0
    %998 = vmatprep.subr.mxu0 0.0
    %999 = vmatpush1.msra.mxu0 0.0
    %1000 = vmatprep.subr.mxu0 0.0
    %1001 = vmatpush1.msra.mxu0 0.0
    %1002 = vmatprep.subr.mxu0 0.0
    %1003 = vmatpush1.msra.mxu0 0.0
    %1004 = vmatprep.subr.mxu0 0.0
    %1005 = vmatpush1.msra.mxu0 0.0
    %1006 = vmatprep.subr.mxu0 0.0
    %1007 = vmatpush1.msra.mxu0 0.0
    %1008 = vmatprep.subr.mxu0 0.0
    %1009 = vmatpush1.msra.mxu0 0.0
    %1010 = vmatprep.subr.mxu0 0.0
    %1011 = vmatpush1.msra.mxu0 0.0
    %1012 = vmatprep.subr.mxu0 0.0
    %1013 = vmatpush1.msra.mxu0 0.0
    %1014 = vmatprep.subr.mxu0 0.0
    %1015 = vmatpush1.msra.mxu0 %v324
    %1016 = vmatprep.subr.mxu0 0.0
    %1017 = vmatpush1.msra.mxu0 %v323
    %1018 = vmatprep.subr.mxu0 0.0
    %1019 = vmatpush1.msra.mxu0 %v322
    %1020 = vmatprep.subr.mxu0 0.0
    %1021 = vmatpush1.msra.mxu0 %v321
    %1022 = vmatprep.subr.mxu0 0.0
    %1023 = vmatpush2.msra.mxu0 0.0
    %1024 = vmatprep.subr.mxu0 0.0
    %1025 = vmatpush2.msra.mxu0 0.0
    %1026 = vmatprep.subr.mxu0 0.0
    %1027 = vmatpush2.msra.mxu0 0.0
    %1028 = vmatprep.subr.mxu0 0.0
    %1029 = vmatpush2.msra.mxu0 0.0
    %1030 = vmatprep.subr.mxu0 0.0
    %1031 = vmatpush2.msra.mxu0 0.0
    %1032 = vmatprep.subr.mxu0 0.0
    %1033 = vmatpush2.msra.mxu0 0.0
    %1034 = vmatprep.subr.mxu0 0.0
    %1035 = vmatpush2.msra.mxu0 0.0
    %1036 = vmatprep.subr.mxu0 0.0
    %1037 = vmatpush2.msra.mxu0 0.0
    %1038 = vmatprep.subr.mxu0 0.0
    %1039 = vmatpush2.msra.mxu0 0.0
    %1040 = vmatprep.subr.mxu0 0.0
    %1041 = vmatpush2.msra.mxu0 0.0
    %1042 = vmatprep.subr.mxu0 0.0
    %1043 = vmatpush2.msra.mxu0 0.0
    %1044 = vmatprep.subr.mxu0 0.0
    %1045 = vmatpush2.msra.mxu0 0.0
    %1046 = vmatprep.subr.mxu0 0.0
    %1047 = vmatpush2.msra.mxu0 0.0
    %1048 = vmatprep.subr.mxu0 0.0
    %1049 = vmatpush2.msra.mxu0 0.0
    %1050 = vmatprep.subr.mxu0 0.0
    %1051 = vmatpush2.msra.mxu0 0.0
    %1052 = vmatprep.subr.mxu0 0.0
    %1053 = vmatpush2.msra.mxu0 0.0
    %1054 = vmatprep.mubr.f32.mxu0 0.0
    %1055 = vmatmul.mubr.f32.gmra.mxu0 %v988
    %v1056 = vpop.f32.mrf.mxu0
    %v1057 = vadd.f32 %v331, %v1056
    %v1058 = vpop.f32.mrf.mxu0
    %1059 = vdwg.mxu0
    %v1061 = vrot.slane %v1057, 4
    %v1063 = vadd.f32 %v318, %v1061
    %v1064 = vxor.u32 %v1063, 2147483648
    %v1065 = vmul.f32 %v1064, 1.442695
    %v1066 = vpow.pop %v1065
    %v1067 = vadd.f32 %v1066, 1.0
    %v1068 = vrcp.pop %v1067
    %v1069 = vmul.f32 1.0, %v1068
    %1070 = vrot.lane.b32.xlu0 %v1061, 64
    %v1071 = vpop.permute.xlu0 %1070
    %v1073 = vmul.f32 %v1069, %v1071
    %1075 = vrot.lane.b32.xlu0 %v1073, 64
    %v1076 = vpop.permute.xlu0 %1075
    %v1078 = vadd.f32 %v318, %v1076
    %v1079 = vtanh.pop %v1078
    %v1080 = vsub.f32 1.0, %v1069
    %1082 = vrot.lane.b32.xlu0 %v1079, 96
    %v1083 = vpop.permute.xlu0 %1082
    %v1085 = vmul.f32 %v1080, %v1083
    %v1086 = vrot.slane %v979, 6
    %v1088 = vmul.f32 %v1069, %v1086
    %v1089 = vadd.f32 %v1085, %v1088
    %1091 = vrot.lane.b32.xlu0 %v1089, 96
    %v1092 = vpop.permute.xlu0 %1091
    %1094 = vst.msk [vmem:[#allocation2 + $0x8] sm:$0x30] %vm658, %v1092
    %v1095 = vrot.slane %v1089, 4
    %1096 = vrot.lane.b32.xlu0 %v1095, 96
    %v1097 = vpop.permute.xlu0 %1096
    %v1098 = vsel %vm100, %v1097, 0
    %1100 = vmatprep.subr.mxu0 0.0
    %1101 = vmatpush1.msra.mxu0 0.0
    %1102 = vmatprep.subr.mxu0 0.0
    %1103 = vmatpush1.msra.mxu0 0.0
    %1104 = vmatprep.subr.mxu0 0.0
    %1105 = vmatpush1.msra.mxu0 0.0
    %1106 = vmatprep.subr.mxu0 0.0
    %1107 = vmatpush1.msra.mxu0 0.0
    %1108 = vmatprep.subr.mxu0 0.0
    %1109 = vmatpush1.msra.mxu0 0.0
    %1110 = vmatprep.subr.mxu0 0.0
    %1111 = vmatpush1.msra.mxu0 0.0
    %1112 = vmatprep.subr.mxu0 0.0
    %1113 = vmatpush1.msra.mxu0 0.0
    %1114 = vmatprep.subr.mxu0 0.0
    %1115 = vmatpush1.msra.mxu0 0.0
    %1116 = vmatprep.subr.mxu0 0.0
    %1117 = vmatpush1.msra.mxu0 0.0
    %1118 = vmatprep.subr.mxu0 0.0
    %1119 = vmatpush1.msra.mxu0 0.0
    %1120 = vmatprep.subr.mxu0 0.0
    %1121 = vmatpush1.msra.mxu0 0.0
    %1122 = vmatprep.subr.mxu0 0.0
    %1123 = vmatpush1.msra.mxu0 0.0
    %1124 = vmatprep.subr.mxu0 0.0
    %1125 = vmatpush1.msra.mxu0 %v324
    %1126 = vmatprep.subr.mxu0 0.0
    %1127 = vmatpush1.msra.mxu0 %v323
    %1128 = vmatprep.subr.mxu0 0.0
    %1129 = vmatpush1.msra.mxu0 %v322
    %1130 = vmatprep.subr.mxu0 0.0
    %1131 = vmatpush1.msra.mxu0 %v321
    %1132 = vmatprep.subr.mxu0 0.0
    %1133 = vmatpush2.msra.mxu0 0.0
    %1134 = vmatprep.subr.mxu0 0.0
    %1135 = vmatpush2.msra.mxu0 0.0
    %1136 = vmatprep.subr.mxu0 0.0
    %1137 = vmatpush2.msra.mxu0 0.0
    %1138 = vmatprep.subr.mxu0 0.0
    %1139 = vmatpush2.msra.mxu0 0.0
    %1140 = vmatprep.subr.mxu0 0.0
    %1141 = vmatpush2.msra.mxu0 0.0
    %1142 = vmatprep.subr.mxu0 0.0
    %1143 = vmatpush2.msra.mxu0 0.0
    %1144 = vmatprep.subr.mxu0 0.0
    %1145 = vmatpush2.msra.mxu0 0.0
    %1146 = vmatprep.subr.mxu0 0.0
    %1147 = vmatpush2.msra.mxu0 0.0
    %1148 = vmatprep.subr.mxu0 0.0
    %1149 = vmatpush2.msra.mxu0 0.0
    %1150 = vmatprep.subr.mxu0 0.0
    %1151 = vmatpush2.msra.mxu0 0.0
    %1152 = vmatprep.subr.mxu0 0.0
    %1153 = vmatpush2.msra.mxu0 0.0
    %1154 = vmatprep.subr.mxu0 0.0
    %1155 = vmatpush2.msra.mxu0 0.0
    %1156 = vmatprep.subr.mxu0 0.0
    %1157 = vmatpush2.msra.mxu0 0.0
    %1158 = vmatprep.subr.mxu0 0.0
    %1159 = vmatpush2.msra.mxu0 0.0
    %1160 = vmatprep.subr.mxu0 0.0
    %1161 = vmatpush2.msra.mxu0 0.0
    %1162 = vmatprep.subr.mxu0 0.0
    %1163 = vmatpush2.msra.mxu0 0.0
    %1164 = vmatprep.mubr.f32.mxu0 0.0
    %1165 = vmatmul.mubr.f32.gmra.mxu0 %v1098
    %v1166 = vpop.f32.mrf.mxu0
    %v1167 = vadd.f32 %v331, %v1166
    %v1168 = vpop.f32.mrf.mxu0
    %1169 = vdwg.mxu0
    %v1171 = vrot.slane %v1167, 2
    %v1173 = vadd.f32 %v318, %v1171
    %v1174 = vxor.u32 %v1173, 2147483648
    %v1175 = vmul.f32 %v1174, 1.442695
    %v1176 = vpow.pop %v1175
    %v1177 = vadd.f32 %v1176, 1.0
    %v1178 = vrcp.pop %v1177
    %v1179 = vmul.f32 1.0, %v1178
    %1180 = vrot.lane.b32.xlu0 %v1171, 64
    %v1181 = vpop.permute.xlu0 %1180
    %v1183 = vmul.f32 %v1179, %v1181
    %1185 = vrot.lane.b32.xlu0 %v1183, 64
    %v1186 = vpop.permute.xlu0 %1185
    %v1188 = vadd.f32 %v318, %v1186
    %v1189 = vtanh.pop %v1188
    %v1190 = vsub.f32 1.0, %v1179
    %1192 = vrot.lane.b32.xlu0 %v1189, 96
    %v1193 = vpop.permute.xlu0 %1192
    %v1195 = vmul.f32 %v1190, %v1193
    %v1196 = vrot.slane %v1089, 6
    %v1198 = vmul.f32 %v1179, %v1196
    %v1199 = vadd.f32 %v1195, %v1198
    %1201 = vrot.lane.b32.xlu0 %v1199, 96
    %v1202 = vpop.permute.xlu0 %1201
    %1204 = vst.msk [vmem:[#allocation2 + $0x8] sm:$0xc0] %vm769, %v1202
    %1205 = vst.msk [vmem:[#allocation10 - $0x6] sm:$0xc0] %vm769, %v1202
    %v1206 = vld [vmem:[#allocation2] sm:$0xff]
    %v1207 = vld [vmem:[#allocation2 + $0x8] sm:$0xff]
    %v1208 = vld [vmem:[%s10] sm:$0xff]
    %v1209 = vld [vmem:[%s10 + $0x8] sm:$0xff]
    %v1210 = vld [vmem:[%s10 + $0x10] sm:$0xff]
    %v1211 = vld [vmem:[%s10 + $0x18] sm:$0xff]
    %v1212 = vld [vmem:[#allocation3] sm:$0x1]
    %v1214 = vlaneseq
    %v1215 = vshrl.u32 %v1214, 7
    %v1216 = vsub.s32 0, %v1215
    %v1217 = vrot.slane %v1212, %v1216
    %v1220 = vsel %vm100, %v1206, 0
    %v1223 = vsel %vm100, %v1207, 0
    %1225 = vmatprep.subr.mxu0 0.0
    %1226 = vmatpush1.msra.mxu0 0.0
    %1227 = vmatprep.subr.mxu0 0.0
    %1228 = vmatpush1.msra.mxu0 0.0
    %1229 = vmatprep.subr.mxu0 0.0
    %1230 = vmatpush1.msra.mxu0 0.0
    %1231 = vmatprep.subr.mxu0 0.0
    %1232 = vmatpush1.msra.mxu0 0.0
    %1233 = vmatprep.subr.mxu0 0.0
    %1234 = vmatpush1.msra.mxu0 0.0
    %1235 = vmatprep.subr.mxu0 0.0
    %1236 = vmatpush1.msra.mxu0 0.0
    %1237 = vmatprep.subr.mxu0 0.0
    %1238 = vmatpush1.msra.mxu0 0.0
    %1239 = vmatprep.subr.mxu0 0.0
    %1240 = vmatpush1.msra.mxu0 0.0
    %1241 = vmatprep.subr.mxu0 0.0
    %1242 = vmatpush1.msra.mxu0 0.0
    %1243 = vmatprep.subr.mxu0 0.0
    %1244 = vmatpush1.msra.mxu0 0.0
    %1245 = vmatprep.subr.mxu0 0.0
    %1246 = vmatpush1.msra.mxu0 0.0
    %1247 = vmatprep.subr.mxu0 0.0
    %1248 = vmatpush1.msra.mxu0 0.0
    %1249 = vmatprep.subr.mxu0 0.0
    %1250 = vmatpush1.msra.mxu0 %v1211
    %1251 = vmatprep.subr.mxu0 0.0
    %1252 = vmatpush1.msra.mxu0 %v1210
    %1253 = vmatprep.subr.mxu0 0.0
    %1254 = vmatpush1.msra.mxu0 %v1209
    %1255 = vmatprep.subr.mxu0 0.0
    %1256 = vmatpush1.msra.mxu0 %v1208
    %1257 = vmatprep.subr.mxu0 0.0
    %1258 = vmatpush2.msra.mxu0 0.0
    %1259 = vmatprep.subr.mxu0 0.0
    %1260 = vmatpush2.msra.mxu0 0.0
    %1261 = vmatprep.subr.mxu0 0.0
    %1262 = vmatpush2.msra.mxu0 0.0
    %1263 = vmatprep.subr.mxu0 0.0
    %1264 = vmatpush2.msra.mxu0 0.0
    %1265 = vmatprep.subr.mxu0 0.0
    %1266 = vmatpush2.msra.mxu0 0.0
    %1267 = vmatprep.subr.mxu0 0.0
    %1268 = vmatpush2.msra.mxu0 0.0
    %1269 = vmatprep.subr.mxu0 0.0
    %1270 = vmatpush2.msra.mxu0 0.0
    %1271 = vmatprep.subr.mxu0 0.0
    %1272 = vmatpush2.msra.mxu0 0.0
    %1273 = vmatprep.subr.mxu0 0.0
    %1274 = vmatpush2.msra.mxu0 0.0
    %1275 = vmatprep.subr.mxu0 0.0
    %1276 = vmatpush2.msra.mxu0 0.0
    %1277 = vmatprep.subr.mxu0 0.0
    %1278 = vmatpush2.msra.mxu0 0.0
    %1279 = vmatprep.subr.mxu0 0.0
    %1280 = vmatpush2.msra.mxu0 0.0
    %1281 = vmatprep.subr.mxu0 0.0
    %1282 = vmatpush2.msra.mxu0 0.0
    %1283 = vmatprep.subr.mxu0 0.0
    %1284 = vmatpush2.msra.mxu0 0.0
    %1285 = vmatprep.subr.mxu0 0.0
    %1286 = vmatpush2.msra.mxu0 0.0
    %1287 = vmatprep.subr.mxu0 0.0
    %1288 = vmatpush2.msra.mxu0 0.0
    %1289 = vmatprep.mubr.f32.mxu0 0.0
    %1290 = vmatmul.mubr.f32.gmra.mxu0 %v1220
    %v1291 = vpop.f32.mrf.mxu0
    %v1292 = vadd.f32 %v1217, %v1291
    %v1293 = vpop.f32.mrf.mxu0
    %1294 = vmatprep.mubr.f32.mxu0 0.0
    %1295 = vmatmul.mubr.f32.gmra.mxu0 %v1223
    %v1296 = vpop.f32.mrf.mxu0
    %v1297 = vadd.f32 %v1217, %v1296
    %v1298 = vpop.f32.mrf.mxu0
    %1299 = vdwg.mxu0
    %vm1300 = vcmask 7168
    %1301 = vst.msk [vmem:[%s12] sm:$0xff] %vm1300, %v1292
    %1302 = vst.msk [vmem:[%s12 + $0x8] sm:$0xff] %vm1300, %v1297
    // Predicated region
    $region62: #{tpu_custom_call.1} parent=1 // pred_check
      _
    $region63: #{tpu_custom_call.1} parent=1 // pred_check_branch
      %1304 = sbr.rel (0) target = $region65
    $region64: #{tpu_custom_call.1} parent=1 // pred_region
      _
    $region65: #{tpu_custom_call.1} parent=1 // pred_fallthru
      _
    // Predicated region
    $region66: #{tpu_custom_call.1} parent=1 // pred_check
      _
    $region67: #{tpu_custom_call.1} parent=1 // pred_check_branch
      %1306 = sbr.rel (0) target = $region69
    $region68: #{tpu_custom_call.1} parent=1 // pred_region
      %s1308 = ssub.s32 32, 32
      %1309 = vsyncadd [#allocation6], %s1308
      %s1311 = sshll.u32 [#allocation10], 4
      %s1312 = int_to_ptr.vmem [resolvable:$true] %s1311
      %1314 = dma.vmem_to_hbm [thread:$0]  %s1312, 32, %s13, [#allocation6]
    $region69: #{tpu_custom_call.1} parent=1 // pred_fallthru
      _
    // Predicated region
    $region70: #{tpu_custom_call.1} parent=1 // pred_check
      _
    $region71: #{tpu_custom_call.1} parent=1 // pred_check_branch
      %1316 = sbr.rel (0) target = $region73
    $region72: #{tpu_custom_call.1} parent=1 // pred_region
      _
    $region73: #{tpu_custom_call.1} parent=1 // pred_fallthru
      _
    // Predicated region
    $region74: #{tpu_custom_call.1} parent=1 // pred_check
      _
    $region75: #{tpu_custom_call.1} parent=1 // pred_check_branch
      %1318 = sbr.rel (0) target = $region77
    $region76: #{tpu_custom_call.1} parent=1 // pred_region
      %1319 = dma.done [#allocation6], 32
    $region77: #{tpu_custom_call.1} parent=1 // pred_fallthru
      _
    %1320 = vsyncpa [#allocation5], 1
    %1321 = vsyncpa [#allocation8], 1
    %1322 = vsyncpa [#allocation6], 1

</llo_original>
